<compile_context>
chip_gen: v6e
topology: v6e:2x2x1
jax: 0.10.0
libtpu: 0.0.40
codegen_flags: <defaults>
</compile_context>

<pallas_src>
import functools

import jax
import jax.numpy as jnp
from jax import lax
from jax.experimental import pallas as pl
from jax.experimental.pallas import tpu as pltpu


def _round_up(x, m):
    return (x + m - 1) // m * m


def _pick_chunk(tm, target=512):
    """Largest multiple of 8 that divides `tm` and is <= target (tm % 8 == 0)."""
    best = 8
    c = 8
    while c <= min(tm, target):
        if tm % c == 0:
            best = c
        c += 8
    return best


# ----------------------------- Pallas kernel --------------------------------

def _musicgen_kernel(frames_ref, w_emb_ref, w_lyr_ref, b_lyr_ref, mask_ref,
                     out_ref, h_ref, *, num_layers, chunk, num_chunks, unroll):
    """grid = (M_tiles, L).  One M tile = BT whole batch rows (TM = BT * S_pad).

    frames_ref : (TM, F_pad)        bf16  -- framed audio rows for this M tile
    w_emb_ref  : (F_pad, D_pad)     bf16  -- frame -> hidden embedding (const)
    w_lyr_ref  : (1, D_pad, D_pad)  bf16  -- weights of layer l (streamed)
    b_lyr_ref  : (L, D_pad)         f32   -- full bias table (const)
    mask_ref   : (ROWS_OUT, TM)     f32   -- 1/S on valid seq rows (const)
    out_ref    : (ROWS_OUT, D_pad)  f32   -- per-batch mean over seq
    h_ref      : (TM, D_pad)        f32   -- hidden-state carry across layers
    """
    l = pl.program_id(1)

    # "EnCodec + decoder embedding" stand-in, once per M tile, chunked so the
    # f32 MXU result never materialises a full-tile temporary.
    @pl.when(l == 0)
    def _():
        def emb_chunk(c, carry):
            r0 = pl.multiple_of(c * chunk, chunk)
            h_ref[pl.ds(r0, chunk), :] = jnp.dot(
                frames_ref[pl.ds(r0, chunk), :], w_emb_ref[...],
                preferred_element_type=jnp.float32)
            return carry
        lax.fori_loop(0, num_chunks, emb_chunk, 0, unroll=unroll)

    # Decoder-layer stand-in: bf16 matmul (f32 MXU acc) + bias + GELU +
    # residual, processed in row chunks so the bf16 cast / f32 proj temporaries
    # stay bounded at chunk x D_pad.  In-place write-back is safe: each output
    # row depends only on its own input row.
    bias = b_lyr_ref[pl.ds(l, 1), :]                 # (1, D_pad) f32

    def layer_chunk(c, carry):
        r0 = pl.multiple_of(c * chunk, chunk)
        h_c = h_ref[pl.ds(r0, chunk), :]
        proj = jnp.dot(h_c.astype(jnp.bfloat16), w_lyr_ref[0],
                       preferred_element_type=jnp.float32) + bias
        h_ref[pl.ds(r0, chunk), :] = jax.nn.gelu(proj, approximate=True) + h_c
        return carry
    lax.fori_loop(0, num_chunks, layer_chunk, 0, unroll=unroll)

    # aggregate(hidden_states[-1], 'mean'): one MXU matmul against the
    # precomputed mean mask -> one full-width (ROWS_OUT, D_pad) f32 store.
    @pl.when(l == num_layers - 1)
    def _():
        out_ref[...] = jnp.dot(mask_ref[...], h_ref[...],
                               preferred_element_type=jnp.float32)


# ------------------------------ JAX wrapper ----------------------------------

def musicgen_forward(wav, params, *, frame_size, single_buffer_consts=True):
    """wav: [B, C, T] float32.  Returns aggregated features [B, D] float32."""
    B, C, T = wav.shape
    S = T // frame_size
    F = C * frame_size
    w_emb, w_lyr, b_lyr = params
    L, D, _ = w_lyr.shape

    S_pad = _round_up(S, 8)                      # sublane-aligned seq rows/batch
    F_pad = _round_up(F, 128)                    # lane-aligned frame features
    # v6e/v7x MXUs are 256-wide; only pay the 256-alignment when D is big.
    D_pad = _round_up(D, 256) if D >= 256 else _round_up(D, 128)

    # --- M tiling: whole batches per tile; >= 2 tiles when B >= 2 so both v7x
    # TensorCores get work; TM bounded so carry + temporaries fit VMEM.
    rows_budget = 1024
    BT = min(B, max(1, rows_budget // S_pad))
    if B >= 2:
        BT = min(BT, pl.cdiv(B, 2))
    num_m = pl.cdiv(B, BT)
    B_pad = num_m * BT
    TM = BT * S_pad
    ROWS_OUT = _round_up(BT, 8)                  # padded out rows per tile

    CHUNK = _pick_chunk(TM, 512)
    NUM_CHUNKS = TM // CHUNK
    UNROLL = True if NUM_CHUNKS <= 8 else 2

    # --- frame the waveform (channels-last features) -------------------------
    wav = wav[:, :, :S * frame_size]
    if C == 1:
        frames = wav.reshape(B, S, frame_size)   # pure reshape, no HBM transpose
    else:
        # TODO(synk): for C>1 the framing transpose could be folded into the
        # frames index_map instead of a separate HBM pass.
        frames = wav.reshape(B, C, S, frame_size)
        frames = jnp.transpose(frames, (0, 2, 1, 3)).reshape(B, S, F)
    frames = jnp.pad(frames, ((0, B_pad - B), (0, S_pad - S), (0, F_pad - F)))
    frames = frames.reshape(B_pad * S_pad, F_pad).astype(jnp.bfloat16)

    # --- pad weights to lane-dense shapes -------------------------------------
    w_emb_p = jnp.pad(w_emb, ((0, F_pad - F), (0, D_pad - D))).astype(jnp.bfloat16)
    w_lyr_p = jnp.pad(w_lyr, ((0, 0), (0, D_pad - D), (0, D_pad - D))).astype(jnp.bfloat16)
    b_lyr_p = jnp.pad(b_lyr, ((0, 0), (0, D_pad - D))).astype(jnp.float32)

    # --- mean mask: row bt carries 1/S over its batch's valid seq rows --------
    bt_idx = jnp.arange(ROWS_OUT, dtype=jnp.int32)[:, None]
    col = jnp.arange(TM, dtype=jnp.int32)[None, :]
    valid = (col >= bt_idx * S_pad) & (col < bt_idx * S_pad + S) & (bt_idx < BT)
    mask = jnp.where(valid, jnp.float32(1.0 / S), jnp.float32(0.0))

    nb = 1 if single_buffer_consts else 2
    pm = dict(pipeline_mode=pl.Buffered(1)) if single_buffer_consts else {}
    in_specs = [
        pl.BlockSpec((TM, F_pad), lambda m, l: (m, 0), **pm),            # frames
        pl.BlockSpec((F_pad, D_pad), lambda m, l: (0, 0), **pm),         # embed W
        pl.BlockSpec((1, D_pad, D_pad), lambda m, l: (l, 0, 0)),         # layer W
        pl.BlockSpec((L, D_pad), lambda m, l: (0, 0), **pm),             # bias tbl
        pl.BlockSpec((ROWS_OUT, TM), lambda m, l: (0, 0), **pm),         # mean mask
    ]
    out_spec = pl.BlockSpec((ROWS_OUT, D_pad), lambda m, l: (m, 0))

    # --- explicit VMEM budget (>= default 32 MiB, <= 56 MiB for v7x) ----------
    vmem_bytes = (
        TM * D_pad * 4                      # f32 hidden-state carry
        + nb * TM * F_pad * 2               # frames
        + nb * F_pad * D_pad * 2            # embed W
        + 2 * D_pad * D_pad * 2             # layer W (double-buffered stream)
        + nb * L * D_pad * 4                # bias table
        + nb * ROWS_OUT * TM * 4            # mean mask
        + 2 * ROWS_OUT * D_pad * 4          # out block
        + CHUNK * D_pad * (2 + 4 + 4)       # chunk temporaries
    )
    vmem_limit = int(min(max(vmem_bytes * 3 // 2 + (2 << 20), 32 << 20), 56 << 20))

    m_rows = B_pad * S_pad
    cost = pl.CostEstimate(
        flops=int(2 * m_rows * F_pad * D_pad
                  + 2 * L * m_rows * D_pad * D_pad
                  + 2 * num_m * ROWS_OUT * TM * D_pad),
        transcendentals=int(L * m_rows * D_pad),
        bytes_accessed=int(m_rows * F_pad * 2 + F_pad * D_pad * 2
                           + num_m * L * D_pad * D_pad * 2 + L * D_pad * 4
                           + ROWS_OUT * TM * 4
                           + num_m * ROWS_OUT * D_pad * 4),
    )

    kernel = functools.partial(_musicgen_kernel, num_layers=L, chunk=CHUNK,
                               num_chunks=NUM_CHUNKS, unroll=UNROLL)

    out = pl.pallas_call(
        kernel,
        out_shape=jax.ShapeDtypeStruct((num_m * ROWS_OUT, D_pad), jnp.float32),
        grid_spec=pltpu.PrefetchScalarGridSpec(
            num_scalar_prefetch=0,
            grid=(num_m, L),
            in_specs=in_specs,
            out_specs=out_spec,
            scratch_shapes=[pltpu.VMEM((TM, D_pad), jnp.float32)],
        ),
        compiler_params=pltpu.CompilerParams(
            dimension_semantics=("parallel", "arbitrary"),
            vmem_limit_bytes=vmem_limit),
        cost_estimate=cost,
    )(frames, w_emb_p, w_lyr_p, b_lyr_p, mask)

    out = out.reshape(num_m, ROWS_OUT, D_pad)[:, :BT, :]
    out = out.reshape(num_m * BT, D_pad)
    return out[:B, :D]


def init_params(key, frame_feat, hidden, num_layers):
    k_emb, k_w, k_b = jax.random.split(key, 3)
    w_emb = (jax.random.normal(k_emb, (frame_feat, hidden), jnp.float32)
             * 0.05).astype(jnp.bfloat16)
    w_lyr = (jax.random.normal(k_w, (num_layers, hidden, hidden), jnp.float32)
             * 0.05).astype(jnp.bfloat16)
    b_lyr = (jax.random.normal(k_b, (num_layers, hidden), jnp.float32)
             * 0.01).astype(jnp.float32)
    return w_emb, w_lyr, b_lyr


def reference_forward(wav, params, *, frame_size):
    """Pure-JAX reference mirroring the kernel semantics (bf16 matmuls, f32 acc)."""
    B, C, T = wav.shape
    S = T // frame_size
    F = C * frame_size
    frames = wav[:, :, :S * frame_size].reshape(B, C, S, frame_size)
    frames = jnp.transpose(frames, (0, 2, 1, 3)).reshape(B, S, F)
    frames = frames.astype(jnp.bfloat16)
    w_emb, w_lyr, b_lyr = params
    h = jnp.einsum("bsf,fd->bsd", frames, w_emb,
                   preferred_element_type=jnp.float32)
    for l in range(w_lyr.shape[0]):
        proj = jnp.einsum("bsd,de->bse", h.astype(jnp.bfloat16), w_lyr[l],
                          preferred_element_type=jnp.float32) + b_lyr[l]
        h = jax.nn.gelu(proj, approximate=True) + h
    return h.mean(axis=-2)   # aggregate(..., 'mean'): mean over seq dim


# --------------------------------- main ---------------------------------------

if __name__ == "__main__":
    B, C, T = 2, 1, 128          # wav: [batch, channel, seq_len]
    FRAME = 16                   # frame size -> S = 8 frames, F = 16 features
    HIDDEN = 32                  # synthetic decoder hidden dim
    LAYERS = 2                   # synthetic decoder depth

    key = jax.random.PRNGKey(0)
    k_wav, k_par = jax.random.split(key)
    wav = jax.random.normal(k_wav, (B, C, T), jnp.float32)
    params = init_params(k_par, C * FRAME, HIDDEN, LAYERS)

    try:
        out = jax.block_until_ready(
            musicgen_forward(wav, params, frame_size=FRAME))
    except Exception:
        # Fallback for toolchains without BlockSpec pipeline_mode support:
        # identical kernel, default double-buffering of the constant inputs.
        out = jax.block_until_ready(
            musicgen_forward(wav, params, frame_size=FRAME,
                             single_buffer_consts=False))

    ref = reference_forward(wav, params, frame_size=FRAME)
    assert out.shape == (B, HIDDEN), out.shape
    # Tolerance reflects bf16 matmuls on the main path; the mean is exact f32.
    assert jnp.allclose(out, ref, atol=2e-3, rtol=1e-2), \
        float(jnp.max(jnp.abs(out - ref)))

    print("KERNEL_OK")
</pallas_src>

<mosaic_0001>
module attributes {stable_mosaic.version = 11 : i64} {
  func.func @_musicgen_kernel(%arg0: i32, %arg1: i32, %arg2: memref<8x128xbf16, #tpu.memory_space<vmem>>, %arg3: memref<128x128xbf16, #tpu.memory_space<vmem>>, %arg4: memref<1x128x128xbf16, #tpu.memory_space<vmem>>, %arg5: memref<2x128xf32, #tpu.memory_space<vmem>>, %arg6: memref<8x8xf32, #tpu.memory_space<vmem>>, %arg7: memref<8x128xf32, #tpu.memory_space<vmem>>, %arg8: memref<8x128xf32, #tpu.memory_space<vmem>>) attributes {dimension_semantics = [#tpu.dimension_semantics<parallel>, #tpu.dimension_semantics<arbitrary>], iteration_bounds = array<i64: 2, 2>, scalar_prefetch = 0 : i64, scratch_operands = 1 : i64, tpu.core_type = #tpu.core_type<tc>, window_params = [{pipeline_mode = #tpu.pipeline_mode<synchronous>, transform_indices = @transform_0, window_bounds = array<i64: 8, 128>}, {pipeline_mode = #tpu.pipeline_mode<synchronous>, transform_indices = @transform_1, window_bounds = array<i64: 128, 128>}, {transform_indices = @transform_2, window_bounds = array<i64: 1, 128, 128>}, {pipeline_mode = #tpu.pipeline_mode<synchronous>, transform_indices = @transform_3, window_bounds = array<i64: 2, 128>}, {pipeline_mode = #tpu.pipeline_mode<synchronous>, transform_indices = @transform_4, window_bounds = array<i64: 8, 8>}, {transform_indices = @transform_5, window_bounds = array<i64: 8, 128>}]} {
    %c0_i32 = arith.constant 0 : i32
    %0 = arith.cmpi eq, %arg1, %c0_i32 : i32
    %1 = arith.extui %0 : i1 to i32
    %c0_i32_0 = arith.constant 0 : i32
    %2 = arith.cmpi ne, %1, %c0_i32_0 : i32
    scf.if %2 {
      %c0_i32_13 = arith.constant 0 : i32
      %c8_i32_14 = arith.constant 8 : i32
      %34 = arith.muli %c0_i32_13, %c8_i32_14 : i32
      %35 = tpu.assume_multiple %34, 8 : i32
      %36 = arith.index_cast %35 : i32 to index
      %c0_15 = arith.constant 0 : index
      %37 = vector.load %arg2[%36, %c0_15] : memref<8x128xbf16, #tpu.memory_space<vmem>>, vector<8x128xbf16>
      %c0_16 = arith.constant 0 : index
      %c0_17 = arith.constant 0 : index
      %38 = vector.load %arg3[%c0_16, %c0_17] : memref<128x128xbf16, #tpu.memory_space<vmem>>, vector<128x128xbf16>
      %cst_18 = arith.constant dense<0.000000e+00> : vector<8x128xf32>
      %39 = tpu.matmul %37, %38, %cst_18 {dimension_numbers = #tpu.dot_dimension_numbers<[1], [0], [0], [1], [0, 0, 1, 1], [], []>} : vector<8x128xbf16>, vector<128x128xbf16>, vector<8x128xf32> -> vector<8x128xf32>
      %40 = arith.index_cast %35 : i32 to index
      %c0_19 = arith.constant 0 : index
      %41 = vector.load %arg8[%40, %c0_19] : memref<8x128xf32, #tpu.memory_space<vmem>>, vector<8x128xf32>
      tpu.vector_store %arg8[%40, %c0_19], %39 {strides = array<i32>} : memref<8x128xf32, #tpu.memory_space<vmem>>, vector<8x128xf32>,
      %c1_i32_20 = arith.constant 1 : i32
    } else {
    }
    %3 = arith.index_cast %arg1 : i32 to index
    %c0 = arith.constant 0 : index
    %4 = vector.load %arg5[%3, %c0] : memref<2x128xf32, #tpu.memory_space<vmem>>, vector<1x128xf32>
    %c0_i32_1 = arith.constant 0 : i32
    %c8_i32 = arith.constant 8 : i32
    %5 = arith.muli %c0_i32_1, %c8_i32 : i32
    %6 = tpu.assume_multiple %5, 8 : i32
    %7 = arith.index_cast %6 : i32 to index
    %c0_2 = arith.constant 0 : index
    %8 = vector.load %arg8[%7, %c0_2] : memref<8x128xf32, #tpu.memory_space<vmem>>, vector<8x128xf32>
    %9 = arith.truncf %8 : vector<8x128xf32> to vector<8x128xbf16>
    %c0_3 = arith.constant 0 : index
    %c0_4 = arith.constant 0 : index
    %c0_5 = arith.constant 0 : index
    %10 = vector.load %arg4[%c0_3, %c0_4, %c0_5] : memref<1x128x128xbf16, #tpu.memory_space<vmem>>, vector<1x128x128xbf16>
    %11 = vector.shape_cast %10 : vector<1x128x128xbf16> to vector<128x128xbf16>
    %cst = arith.constant dense<0.000000e+00> : vector<8x128xf32>
    %12 = tpu.matmul %9, %11, %cst {dimension_numbers = #tpu.dot_dimension_numbers<[1], [0], [0], [1], [0, 0, 1, 1], [], []>} : vector<8x128xbf16>, vector<128x128xbf16>, vector<8x128xf32> -> vector<8x128xf32>
    %13 = vector.broadcast %4 : vector<1x128xf32> to vector<8x128xf32>
    %14 = arith.addf %12, %13 : vector<8x128xf32>
    %15 = arith.mulf %14, %14 : vector<8x128xf32>
    %16 = arith.mulf %14, %15 : vector<8x128xf32>
    %cst_6 = arith.constant 4.471500e-02 : f32
    %17 = vector.broadcast %cst_6 : f32 to vector<8x128xf32>
    %18 = arith.mulf %17, %16 : vector<8x128xf32>
    %19 = arith.addf %14, %18 : vector<8x128xf32>
    %cst_7 = arith.constant 0.797884583 : f32
    %20 = vector.broadcast %cst_7 : f32 to vector<8x128xf32>
    %21 = arith.mulf %20, %19 : vector<8x128xf32>
    %22 = math.tanh %21 : vector<8x128xf32>
    %cst_8 = arith.constant 1.000000e+00 : f32
    %23 = vector.broadcast %cst_8 : f32 to vector<8x128xf32>
    %24 = arith.addf %23, %22 : vector<8x128xf32>
    %cst_9 = arith.constant 5.000000e-01 : f32
    %25 = vector.broadcast %cst_9 : f32 to vector<8x128xf32>
    %26 = arith.mulf %25, %24 : vector<8x128xf32>
    %27 = arith.mulf %14, %26 : vector<8x128xf32>
    %28 = arith.addf %27, %8 : vector<8x128xf32>
    %29 = arith.index_cast %6 : i32 to index
    %c0_10 = arith.constant 0 : index
    %30 = vector.load %arg8[%29, %c0_10] : memref<8x128xf32, #tpu.memory_space<vmem>>, vector<8x128xf32>
    tpu.vector_store %arg8[%29, %c0_10], %28 {strides = array<i32>} : memref<8x128xf32, #tpu.memory_space<vmem>>, vector<8x128xf32>,
    %c1_i32 = arith.constant 1 : i32
    %c1_i32_11 = arith.constant 1 : i32
    %31 = arith.cmpi eq, %arg1, %c1_i32_11 : i32
    %32 = arith.extui %31 : i1 to i32
    %c0_i32_12 = arith.constant 0 : i32
    %33 = arith.cmpi ne, %32, %c0_i32_12 : i32
    scf.if %33 {
      %c0_13 = arith.constant 0 : index
      %c0_14 = arith.constant 0 : index
      %34 = vector.load %arg6[%c0_13, %c0_14] : memref<8x8xf32, #tpu.memory_space<vmem>>, vector<8x8xf32>
      %c0_15 = arith.constant 0 : index
      %c0_16 = arith.constant 0 : index
      %35 = vector.load %arg8[%c0_15, %c0_16] : memref<8x128xf32, #tpu.memory_space<vmem>>, vector<8x128xf32>
      %cst_17 = arith.constant dense<0.000000e+00> : vector<8x128xf32>
      %36 = tpu.matmul %34, %35, %cst_17 {dimension_numbers = #tpu.dot_dimension_numbers<[1], [0], [0], [1], [0, 0, 1, 1], [], []>} : vector<8x8xf32>, vector<8x128xf32>, vector<8x128xf32> -> vector<8x128xf32>
      %c0_18 = arith.constant 0 : index
      %c0_19 = arith.constant 0 : index
      %37 = vector.load %arg7[%c0_18, %c0_19] : memref<8x128xf32, #tpu.memory_space<vmem>>, vector<8x128xf32>
      tpu.vector_store %arg7[%c0_18, %c0_19], %36 {strides = array<i32>} : memref<8x128xf32, #tpu.memory_space<vmem>>, vector<8x128xf32>,
    } else {
    }
    return
  }
  func.func @transform_0(%arg0: i32, %arg1: i32) -> (i32, i32) {
    %c0_i32 = arith.constant 0 : i32
    %c0_i32_0 = arith.constant 0 : i32
    return %arg0, %c0_i32 : i32, i32
  }
  func.func @transform_1(%arg0: i32, %arg1: i32) -> (i32, i32) {
    %c0_i32 = arith.constant 0 : i32
    %c0_i32_0 = arith.constant 0 : i32
    %c0_i32_1 = arith.constant 0 : i32
    return %c0_i32, %c0_i32_0 : i32, i32
  }
  func.func @transform_2(%arg0: i32, %arg1: i32) -> (i32, i32, i32) {
    %c0_i32 = arith.constant 0 : i32
    %c0_i32_0 = arith.constant 0 : i32
    %c0_i32_1 = arith.constant 0 : i32
    return %arg1, %c0_i32, %c0_i32_0 : i32, i32, i32
  }
  func.func @transform_3(%arg0: i32, %arg1: i32) -> (i32, i32) {
    %c0_i32 = arith.constant 0 : i32
    %c0_i32_0 = arith.constant 0 : i32
    %c0_i32_1 = arith.constant 0 : i32
    return %c0_i32, %c0_i32_0 : i32, i32
  }
  func.func @transform_4(%arg0: i32, %arg1: i32) -> (i32, i32) {
    %c0_i32 = arith.constant 0 : i32
    %c0_i32_0 = arith.constant 0 : i32
    %c0_i32_1 = arith.constant 0 : i32
    return %c0_i32, %c0_i32_0 : i32, i32
  }
  func.func @transform_5(%arg0: i32, %arg1: i32) -> (i32, i32) {
    %c0_i32 = arith.constant 0 : i32
    %c0_i32_0 = arith.constant 0 : i32
    return %arg0, %c0_i32 : i32, i32
  }
}

module attributes {stable_mosaic.version = 11 : i64} {
  func.func @_musicgen_kernel(%arg0: i32, %arg1: i32, %arg2: memref<8x128xbf16, #tpu.memory_space<vmem>>, %arg3: memref<128x128xbf16, #tpu.memory_space<vmem>>, %arg4: memref<1x128x128xbf16, #tpu.memory_space<vmem>>, %arg5: memref<2x128xf32, #tpu.memory_space<vmem>>, %arg6: memref<8x8xf32, #tpu.memory_space<vmem>>, %arg7: memref<8x128xf32, #tpu.memory_space<vmem>>, %arg8: memref<8x128xf32, #tpu.memory_space<vmem>>) attributes {dimension_semantics = [#tpu.dimension_semantics<parallel>, #tpu.dimension_semantics<arbitrary>], iteration_bounds = array<i64: 2, 2>, scalar_prefetch = 0 : i64, scratch_operands = 1 : i64, tpu.core_type = #tpu.core_type<tc>, window_params = [{transform_indices = @transform_0, window_bounds = array<i64: 8, 128>}, {pipeline_mode = #tpu.pipeline_mode<synchronous>, transform_indices = @transform_1, window_bounds = array<i64: 128, 128>}, {transform_indices = @transform_2, window_bounds = array<i64: 1, 128, 128>}, {pipeline_mode = #tpu.pipeline_mode<synchronous>, transform_indices = @transform_3, window_bounds = array<i64: 2, 128>}, {pipeline_mode = #tpu.pipeline_mode<synchronous>, transform_indices = @transform_4, window_bounds = array<i64: 8, 8>}, {transform_indices = @transform_5, window_bounds = array<i64: 8, 128>}]} {
    %c0_i32 = arith.constant 0 : i32
    %0 = arith.cmpi eq, %arg1, %c0_i32 : i32
    %1 = arith.extui %0 : i1 to i32
    %c0_i32_0 = arith.constant 0 : i32
    %2 = arith.cmpi ne, %1, %c0_i32_0 : i32
    scf.if %2 {
      %c0_i32_13 = arith.constant 0 : i32
      %c8_i32_14 = arith.constant 8 : i32
      %34 = arith.muli %c0_i32_13, %c8_i32_14 : i32
      %35 = tpu.assume_multiple %34, 8 : i32
      %36 = arith.index_cast %35 : i32 to index
      %c0_15 = arith.constant 0 : index
      %37 = vector.load %arg2[%36, %c0_15] : memref<8x128xbf16, #tpu.memory_space<vmem>>, vector<8x128xbf16>
      %c0_16 = arith.constant 0 : index
      %c0_17 = arith.constant 0 : index
      %38 = vector.load %arg3[%c0_16, %c0_17] : memref<128x128xbf16, #tpu.memory_space<vmem>>, vector<128x128xbf16>
      %cst_18 = arith.constant dense<0.000000e+00> : vector<8x128xf32>
      %39 = tpu.matmul %37, %38, %cst_18 {dimension_numbers = #tpu.dot_dimension_numbers<[1], [0], [0], [1], [0, 0, 1, 1], [], []>} : vector<8x128xbf16>, vector<128x128xbf16>, vector<8x128xf32> -> vector<8x128xf32>
      %40 = arith.index_cast %35 : i32 to index
      %c0_19 = arith.constant 0 : index
      %41 = vector.load %arg8[%40, %c0_19] : memref<8x128xf32, #tpu.memory_space<vmem>>, vector<8x128xf32>
      tpu.vector_store %arg8[%40, %c0_19], %39 {strides = array<i32>} : memref<8x128xf32, #tpu.memory_space<vmem>>, vector<8x128xf32>,
      %c1_i32_20 = arith.constant 1 : i32
    } else {
    }
    %3 = arith.index_cast %arg1 : i32 to index
    %c0 = arith.constant 0 : index
    %4 = vector.load %arg5[%3, %c0] : memref<2x128xf32, #tpu.memory_space<vmem>>, vector<1x128xf32>
    %c0_i32_1 = arith.constant 0 : i32
    %c8_i32 = arith.constant 8 : i32
    %5 = arith.muli %c0_i32_1, %c8_i32 : i32
    %6 = tpu.assume_multiple %5, 8 : i32
    %7 = arith.index_cast %6 : i32 to index
    %c0_2 = arith.constant 0 : index
    %8 = vector.load %arg8[%7, %c0_2] : memref<8x128xf32, #tpu.memory_space<vmem>>, vector<8x128xf32>
    %9 = arith.truncf %8 : vector<8x128xf32> to vector<8x128xbf16>
    %c0_3 = arith.constant 0 : index
    %c0_4 = arith.constant 0 : index
    %c0_5 = arith.constant 0 : index
    %10 = vector.load %arg4[%c0_3, %c0_4, %c0_5] : memref<1x128x128xbf16, #tpu.memory_space<vmem>>, vector<1x128x128xbf16>
    %11 = vector.shape_cast %10 : vector<1x128x128xbf16> to vector<128x128xbf16>
    %cst = arith.constant dense<0.000000e+00> : vector<8x128xf32>
    %12 = tpu.matmul %9, %11, %cst {dimension_numbers = #tpu.dot_dimension_numbers<[1], [0], [0], [1], [0, 0, 1, 1], [], []>} : vector<8x128xbf16>, vector<128x128xbf16>, vector<8x128xf32> -> vector<8x128xf32>
    %13 = vector.broadcast %4 : vector<1x128xf32> to vector<8x128xf32>
    %14 = arith.addf %12, %13 : vector<8x128xf32>
    %15 = arith.mulf %14, %14 : vector<8x128xf32>
    %16 = arith.mulf %14, %15 : vector<8x128xf32>
    %cst_6 = arith.constant 4.471500e-02 : f32
    %17 = vector.broadcast %cst_6 : f32 to vector<8x128xf32>
    %18 = arith.mulf %17, %16 : vector<8x128xf32>
    %19 = arith.addf %14, %18 : vector<8x128xf32>
    %cst_7 = arith.constant 0.797884583 : f32
    %20 = vector.broadcast %cst_7 : f32 to vector<8x128xf32>
    %21 = arith.mulf %20, %19 : vector<8x128xf32>
    %22 = math.tanh %21 : vector<8x128xf32>
    %cst_8 = arith.constant 1.000000e+00 : f32
    %23 = vector.broadcast %cst_8 : f32 to vector<8x128xf32>
    %24 = arith.addf %23, %22 : vector<8x128xf32>
    %cst_9 = arith.constant 5.000000e-01 : f32
    %25 = vector.broadcast %cst_9 : f32 to vector<8x128xf32>
    %26 = arith.mulf %25, %24 : vector<8x128xf32>
    %27 = arith.mulf %14, %26 : vector<8x128xf32>
    %28 = arith.addf %27, %8 : vector<8x128xf32>
    %29 = arith.index_cast %6 : i32 to index
    %c0_10 = arith.constant 0 : index
    %30 = vector.load %arg8[%29, %c0_10] : memref<8x128xf32, #tpu.memory_space<vmem>>, vector<8x128xf32>
    tpu.vector_store %arg8[%29, %c0_10], %28 {strides = array<i32>} : memref<8x128xf32, #tpu.memory_space<vmem>>, vector<8x128xf32>,
    %c1_i32 = arith.constant 1 : i32
    %c1_i32_11 = arith.constant 1 : i32
    %31 = arith.cmpi eq, %arg1, %c1_i32_11 : i32
    %32 = arith.extui %31 : i1 to i32
    %c0_i32_12 = arith.constant 0 : i32
    %33 = arith.cmpi ne, %32, %c0_i32_12 : i32
    scf.if %33 {
      %c0_13 = arith.constant 0 : index
      %c0_14 = arith.constant 0 : index
      %34 = vector.load %arg6[%c0_13, %c0_14] : memref<8x8xf32, #tpu.memory_space<vmem>>, vector<8x8xf32>
      %c0_15 = arith.constant 0 : index
      %c0_16 = arith.constant 0 : index
      %35 = vector.load %arg8[%c0_15, %c0_16] : memref<8x128xf32, #tpu.memory_space<vmem>>, vector<8x128xf32>
      %cst_17 = arith.constant dense<0.000000e+00> : vector<8x128xf32>
      %36 = tpu.matmul %34, %35, %cst_17 {dimension_numbers = #tpu.dot_dimension_numbers<[1], [0], [0], [1], [0, 0, 1, 1], [], []>} : vector<8x8xf32>, vector<8x128xf32>, vector<8x128xf32> -> vector<8x128xf32>
      %c0_18 = arith.constant 0 : index
      %c0_19 = arith.constant 0 : index
      %37 = vector.load %arg7[%c0_18, %c0_19] : memref<8x128xf32, #tpu.memory_space<vmem>>, vector<8x128xf32>
      tpu.vector_store %arg7[%c0_18, %c0_19], %36 {strides = array<i32>} : memref<8x128xf32, #tpu.memory_space<vmem>>, vector<8x128xf32>,
    } else {
    }
    return
  }
  func.func @transform_0(%arg0: i32, %arg1: i32) -> (i32, i32) {
    %c0_i32 = arith.constant 0 : i32
    %c0_i32_0 = arith.constant 0 : i32
    return %arg0, %c0_i32 : i32, i32
  }
  func.func @transform_1(%arg0: i32, %arg1: i32) -> (i32, i32) {
    %c0_i32 = arith.constant 0 : i32
    %c0_i32_0 = arith.constant 0 : i32
    %c0_i32_1 = arith.constant 0 : i32
    return %c0_i32, %c0_i32_0 : i32, i32
  }
  func.func @transform_2(%arg0: i32, %arg1: i32) -> (i32, i32, i32) {
    %c0_i32 = arith.constant 0 : i32
    %c0_i32_0 = arith.constant 0 : i32
    %c0_i32_1 = arith.constant 0 : i32
    return %arg1, %c0_i32, %c0_i32_0 : i32, i32, i32
  }
  func.func @transform_3(%arg0: i32, %arg1: i32) -> (i32, i32) {
    %c0_i32 = arith.constant 0 : i32
    %c0_i32_0 = arith.constant 0 : i32
    %c0_i32_1 = arith.constant 0 : i32
    return %c0_i32, %c0_i32_0 : i32, i32
  }
  func.func @transform_4(%arg0: i32, %arg1: i32) -> (i32, i32) {
    %c0_i32 = arith.constant 0 : i32
    %c0_i32_0 = arith.constant 0 : i32
    %c0_i32_1 = arith.constant 0 : i32
    return %c0_i32, %c0_i32_0 : i32, i32
  }
  func.func @transform_5(%arg0: i32, %arg1: i32) -> (i32, i32) {
    %c0_i32 = arith.constant 0 : i32
    %c0_i32_0 = arith.constant 0 : i32
    return %arg0, %c0_i32 : i32, i32
  }
}

</mosaic_0001>

<llo_original>
// kernel: tpu_custom_call.1
$region0: #{tpu_custom_call.1}
  #allocation0 [shape = 'u32[]', space=smem, size = 0x4, offset = 0x4, fixed_abs, tag = 'smem constant byte address 0x4 - core index']
  #allocation1 [shape = 'u32[144,128]{1,0:T(1,128)}', space=vmem, size = 0x12000, scoped, tag = 'internal scratch']
  #allocation2 [shape = 'f32[8,128]{1,0:T(8,128)}', space=vmem, size = 0x1000, scoped, tag = 'scratch operand']
  %s0 = inlined_call_operand.hbm [shape: bf16[16,128], index: 0, kind: input, shape index: {}]
  %s1 = inlined_call_operand.hbm [shape: bf16[128,128], index: 1, kind: input, shape index: {}]
  %s2 = inlined_call_operand.hbm [shape: bf16[2,128,128], index: 2, kind: input, shape index: {}]
  %s3 = inlined_call_operand.vmem [shape: f32[2,128], index: 3, kind: input, shape index: {}]
  %s4 = inlined_call_operand.hbm [shape: f32[8,8], index: 4, kind: input, shape index: {}]
  %s5 = inlined_call_operand.hbm [shape: f32[16,128], index: 5, kind: output, shape index: {}]
  %s6 = sld [smem:[#allocation0]]
  $region77: #{tpu_custom_call.1} parent=0
    _
  %s8 = ssub.s32 1, %s6
  %s9 = scalar_select 0, %s8, %s6
  $region1: #{tpu_custom_call.1} parent=0
    #allocation3 [shape = 'u8[2048]{0}', space=vmem, size = 0x800, scoped, tag = 'input window, operand 0, single buffered']
    #allocation4 [shape = 's32[2]{0}', space=sflag, size = 0x8, scoped, tag = 'scoped memory for tpu_custom_call.1']
    #allocation5 [shape = 's32[2]{0}', space=sflag, size = 0x8, scoped, tag = 'scoped memory for tpu_custom_call.1']
    #allocation6 [shape = 'u8[32768]{0}', space=vmem, size = 0x8000, scoped, tag = 'input window, operand 1, single buffered']
    #allocation7 [shape = 's32[1]{0}', space=sflag, size = 0x4, scoped, tag = 'scoped memory for tpu_custom_call.1']
    #allocation8 [shape = 'u8[65536]{0}', space=vmem, size = 0x10000, scoped, tag = 'input window, operand 2']
    #allocation9 [shape = 'u8[4096]{0}', space=vmem, size = 0x1000, scoped, tag = 'input window, operand 4, single buffered']
    #allocation10 [shape = 'u8[8192]{0}', space=vmem, size = 0x2000, scoped, tag = 'output window, operand 0']
    %10 = vsyncpa [#allocation4], 0
    %11 = vsyncpa [#allocation7], 0
    %12 = vsyncpa [#allocation5], 0
    %s13 = scalar_lea.sflag [#allocation5], 1
    %14 = vsyncpa %s13, 0
    loop: start=0, step=1, limit=6
    $region2: #{tpu_custom_call.1} parent=1 // loop_pre_header
      _
    $region3: #{tpu_custom_call.1} parent=1 // loop_header
      %s16 = sphi 0, %s20
      %p17 = scmp.ge.s32.totalorder %s16, 6
      %s23 = sphi 0, %s35
      %s24 = sphi 0, %s31
      %s25 = sphi 0, %s23
      %s26 = sphi 0, %s24
      %s27 = sphi 0, %s25
      %s28 = sphi 0, %s26
      %s38 = sphi 0, %s40
      %s41 = sphi 0, %s38
      %s42 = sphi 0, %s41
      %s58 = sphi 0, %s42
      %s62 = sphi 0, %s62
      %s64 = sphi 0, %s62
      %s65 = sphi 0, %s64
      %s79 = sphi 0, %s65
      %s85 = sphi 0, %s87
      %s88 = sphi 0, %s85
      %s89 = sphi 0, %s88
      %s105 = sphi 0, %s89
      %s109 = sphi 0, %s109
      %s111 = sphi 0, %s109
      %s112 = sphi 0, %s111
      %s126 = sphi 0, %s112
      %s130 = sphi 0, %s130
      %s132 = sphi 0, %s130
      %s133 = sphi 0, %s132
      %s147 = sphi 0, %s133
      %s153 = sphi 0, %s155
      %s156 = sphi 0, %s153
      %s157 = sphi 0, %s156
      %s173 = sphi 0, %s157
    $region4: #{tpu_custom_call.1} parent=1 // loop_header_branch
      %19 = sbr.rel (%p17) target = $region8
    $region5: #{tpu_custom_call.1} parent=1 // loop_body
      %s21 = ssub.s32 %s16, 1
      %s22 = ssub.s32 %s16, 2
      %s29 = sadd.s32 1, %s24
      %p30 = scmp.ge.s32.totalorder %s29, 2
      %s31 = scalar_select %p30, 0, %s29
      %s32 = sadd.s32 1, %s23
      %s33 = scalar_select %p30, %s32, %s23
      %p34 = scmp.ge.s32.totalorder %s33, 2
      %s35 = scalar_select %p34, 0, %s33
      %s36 = ssub.s32 %s23, %s35
      %p37 = scmp.eq.s32.totalorder %s36, 0
      %s39 = sadd.s32 %s38, 1
      %s40 = scalar_select %p37, %s38, %s39
      %p43 = pneg %p37
      %p44 = scmp.eq.s32.totalorder %s16, 3
      %p45 = por %p43, %p44
      %p46 = scmp.ne.s32.totalorder %s38, %s41
      %p47 = scmp.eq.s32.totalorder %s16, 0
      %p48 = por %p46, %p47
      %p49 = scmp.ne.s32.totalorder %s38, %s41
      %p50 = scmp.eq.s32.totalorder %s21, 3
      %p51 = por %p49, %p50
      %p52 = scmp.ne.s32.totalorder %s41, %s42
      %p53 = scmp.eq.s32.totalorder %s21, 0
      %p54 = por %p52, %p53
      %p55 = scmp.ne.s32.totalorder %s41, %s42
      %p56 = scmp.eq.s32.totalorder %s22, 3
      %p57 = por %p55, %p56
      %p59 = scmp.ne.s32.totalorder %s42, %s58
      %p60 = scmp.eq.s32.totalorder %s22, 0
      %p61 = por %p59, %p60
      %s63 = sadd.s32 %s62, 1
      %p66 = scmp.eq.s32.totalorder %s16, 3
      %p67 = scmp.ne.s32.totalorder %s62, %s64
      %p68 = scmp.eq.s32.totalorder %s16, 0
      %p69 = por %p67, %p68
      %p70 = scmp.ne.s32.totalorder %s62, %s64
      %p71 = scmp.eq.s32.totalorder %s21, 3
      %p72 = por %p70, %p71
      %p73 = scmp.ne.s32.totalorder %s64, %s65
      %p74 = scmp.eq.s32.totalorder %s21, 0
      %p75 = por %p73, %p74
      %p76 = scmp.ne.s32.totalorder %s64, %s65
      %p77 = scmp.eq.s32.totalorder %s22, 3
      %p78 = por %p76, %p77
      %p80 = scmp.ne.s32.totalorder %s65, %s79
      %p81 = scmp.eq.s32.totalorder %s22, 0
      %p82 = por %p80, %p81
      %s83 = ssub.s32 %s24, %s31
      %p84 = scmp.eq.s32.totalorder %s83, 0
      %s86 = sadd.s32 %s85, 1
      %s87 = scalar_select %p84, %s85, %s86
      %p90 = pneg %p84
      %p91 = scmp.eq.s32.totalorder %s16, 3
      %p92 = por %p90, %p91
      %p93 = scmp.ne.s32.totalorder %s85, %s88
      %p94 = scmp.eq.s32.totalorder %s16, 0
      %p95 = por %p93, %p94
      %p96 = scmp.ne.s32.totalorder %s85, %s88
      %p97 = scmp.eq.s32.totalorder %s21, 3
      %p98 = por %p96, %p97
      %p99 = scmp.ne.s32.totalorder %s88, %s89
      %p100 = scmp.eq.s32.totalorder %s21, 0
      %p101 = por %p99, %p100
      %p102 = scmp.ne.s32.totalorder %s88, %s89
      %p103 = scmp.eq.s32.totalorder %s22, 3
      %p104 = por %p102, %p103
      %p106 = scmp.ne.s32.totalorder %s89, %s105
      %p107 = scmp.eq.s32.totalorder %s22, 0
      %p108 = por %p106, %p107
      %s110 = sadd.s32 %s109, 1
      %p113 = scmp.eq.s32.totalorder %s16, 3
      %p114 = scmp.ne.s32.totalorder %s109, %s111
      %p115 = scmp.eq.s32.totalorder %s16, 0
      %p116 = por %p114, %p115
      %p117 = scmp.ne.s32.totalorder %s109, %s111
      %p118 = scmp.eq.s32.totalorder %s21, 3
      %p119 = por %p117, %p118
      %p120 = scmp.ne.s32.totalorder %s111, %s112
      %p121 = scmp.eq.s32.totalorder %s21, 0
      %p122 = por %p120, %p121
      %p123 = scmp.ne.s32.totalorder %s111, %s112
      %p124 = scmp.eq.s32.totalorder %s22, 3
      %p125 = por %p123, %p124
      %p127 = scmp.ne.s32.totalorder %s112, %s126
      %p128 = scmp.eq.s32.totalorder %s22, 0
      %p129 = por %p127, %p128
      %s131 = sadd.s32 %s130, 1
      %p134 = scmp.eq.s32.totalorder %s16, 3
      %p135 = scmp.ne.s32.totalorder %s130, %s132
      %p136 = scmp.eq.s32.totalorder %s16, 0
      %p137 = por %p135, %p136
      %p138 = scmp.ne.s32.totalorder %s130, %s132
      %p139 = scmp.eq.s32.totalorder %s21, 3
      %p140 = por %p138, %p139
      %p141 = scmp.ne.s32.totalorder %s132, %s133
      %p142 = scmp.eq.s32.totalorder %s21, 0
      %p143 = por %p141, %p142
      %p144 = scmp.ne.s32.totalorder %s132, %s133
      %p145 = scmp.eq.s32.totalorder %s22, 3
      %p146 = por %p144, %p145
      %p148 = scmp.ne.s32.totalorder %s133, %s147
      %p149 = scmp.eq.s32.totalorder %s22, 0
      %p150 = por %p148, %p149
      %s151 = ssub.s32 %s23, %s35
      %p152 = scmp.eq.s32.totalorder %s151, 0
      %s154 = sadd.s32 %s153, 1
      %s155 = scalar_select %p152, %s153, %s154
      %p158 = pneg %p152
      %p159 = scmp.eq.s32.totalorder %s16, 3
      %p160 = por %p158, %p159
      %p161 = scmp.ne.s32.totalorder %s153, %s156
      %p162 = scmp.eq.s32.totalorder %s16, 0
      %p163 = por %p161, %p162
      %p164 = scmp.ne.s32.totalorder %s153, %s156
      %p165 = scmp.eq.s32.totalorder %s21, 3
      %p166 = por %p164, %p165
      %p167 = scmp.ne.s32.totalorder %s156, %s157
      %p168 = scmp.eq.s32.totalorder %s21, 0
      %p169 = por %p167, %p168
      %p170 = scmp.ne.s32.totalorder %s156, %s157
      %p171 = scmp.eq.s32.totalorder %s22, 3
      %p172 = por %p170, %p171
      %p174 = scmp.ne.s32.totalorder %s157, %s173
      %p175 = scmp.eq.s32.totalorder %s22, 0
      %p176 = por %p174, %p175
      %p177 = scmp.le.s32.totalorder 1, %s16
      %p178 = scmp.lt.s32.totalorder %s16, 5
      %p179 = pnand %p177, %p178
      %p180 = pneg %p179
      // Predicated region
      $region9: #{tpu_custom_call.1} parent=5 // pred_check
        _
      $region10: #{tpu_custom_call.1} parent=5 // pred_check_branch
        %182 = sbr.rel (%p179) target = $region12
      $region11: #{tpu_custom_call.1} parent=5 // pred_region
        %s183 = ssub.s32 %s16, 1
        // Predicated region
        $region13: #{tpu_custom_call.1} parent=11 // pred_check
          %p184 = pneg %p54
        $region14: #{tpu_custom_call.1} parent=11 // pred_check_branch
          %186 = sbr.rel (%p184) target = $region16
        $region15: #{tpu_custom_call.1} parent=11 // pred_region
          %s188 = ssub.s32 64, 64
          %189 = vsyncadd [#allocation4], %s188
          %s190 = smul.addr %s25, 64
          %s191 = scalar_lea.hbm %s0, %s190
          %s193 = sshll.u32 [#allocation3], 4
          %s194 = int_to_ptr.vmem [resolvable:$true] %s193
          %196 = dma.hbm_to_vmem [thread:$0]  %s191, 64, %s194, [#allocation4]
        $region16: #{tpu_custom_call.1} parent=11 // pred_fallthru
          _
        // Predicated region
        $region17: #{tpu_custom_call.1} parent=11 // pred_check
          %p197 = pneg %p75
        $region18: #{tpu_custom_call.1} parent=11 // pred_check_branch
          %199 = sbr.rel (%p197) target = $region20
        $region19: #{tpu_custom_call.1} parent=11 // pred_region
          %s201 = ssub.s32 1024, 1024
          %202 = vsyncadd [#allocation7], %s201
          %s203 = sshll.u32 [#allocation6], 4
          %s204 = int_to_ptr.vmem [resolvable:$true] %s203
          %209 = dma.hbm_to_vmem [thread:$0]  %s1, 1024, %s204, [#allocation7], 64, 64, 4
        $region20: #{tpu_custom_call.1} parent=11 // pred_fallthru
          _
        // Predicated region
        $region21: #{tpu_custom_call.1} parent=11 // pred_check
          %p210 = pneg %p122
        $region22: #{tpu_custom_call.1} parent=11 // pred_check_branch
          %212 = sbr.rel (%p210) target = $region24
        $region23: #{tpu_custom_call.1} parent=11 // pred_region
          _
        $region24: #{tpu_custom_call.1} parent=11 // pred_fallthru
          _
        // Predicated region
        $region25: #{tpu_custom_call.1} parent=11 // pred_check
          %p213 = pneg %p143
        $region26: #{tpu_custom_call.1} parent=11 // pred_check_branch
          %215 = sbr.rel (%p213) target = $region28
        $region27: #{tpu_custom_call.1} parent=11 // pred_region
          %s217 = ssub.s32 128, 128
          %218 = vsyncadd [#allocation7], %s217
          %s220 = sshll.u32 [#allocation9], 4
          %s221 = int_to_ptr.vmem [resolvable:$true] %s220
          %223 = dma.hbm_to_vmem [thread:$0]  %s4, 128, %s221, [#allocation7]
        $region28: #{tpu_custom_call.1} parent=11 // pred_fallthru
          _
      $region12: #{tpu_custom_call.1} parent=5 // pred_fallthru
        _
      %p224 = scmp.lt.s32.totalorder %s16, 4
      // Predicated region
      $region29: #{tpu_custom_call.1} parent=5 // pred_check
        %p225 = pneg %p224
      $region30: #{tpu_custom_call.1} parent=5 // pred_check_branch
        %227 = sbr.rel (%p225) target = $region32
      $region31: #{tpu_custom_call.1} parent=5 // pred_region
        // Predicated region
        $region33: #{tpu_custom_call.1} parent=31 // pred_check
          %p228 = pneg %p95
        $region34: #{tpu_custom_call.1} parent=31 // pred_check_branch
          %230 = sbr.rel (%p228) target = $region36
        $region35: #{tpu_custom_call.1} parent=31 // pred_region
          %s231 = sand.u32 %s16, 1
          %s232 = scalar_lea.sflag [#allocation4], %s231
          %s233 = sand.u32 %s85, 1
          %s234 = smul.addr %s233, 64
          %s235 = scalar_lea.vmem [#allocation8], %s234
          %s237 = ssub.s32 1024, 1024
          %238 = vsyncadd %s232, %s237
          %s239 = smul.addr %s24, 16
          %s240 = smul.addr %s239, 64
          %s241 = scalar_lea.hbm %s2, %s240
          %s242 = sshll.u32 %s235, 4
          %s243 = int_to_ptr.vmem [resolvable:$true] %s242
          %248 = dma.hbm_to_vmem [thread:$0]  %s241, 1024, %s243, %s232, 64, 64, 4
        $region36: #{tpu_custom_call.1} parent=31 // pred_fallthru
          _
      $region32: #{tpu_custom_call.1} parent=5 // pred_fallthru
        _
      %p249 = scmp.le.s32.totalorder 1, %s16
      %p250 = scmp.lt.s32.totalorder %s16, 5
      %p251 = pnand %p249, %p250
      %p252 = pneg %p251
      // Predicated region
      $region37: #{tpu_custom_call.1} parent=5 // pred_check
        _
      $region38: #{tpu_custom_call.1} parent=5 // pred_check_branch
        %254 = sbr.rel (%p251) target = $region40
      $region39: #{tpu_custom_call.1} parent=5 // pred_region
        %s255 = ssub.s32 %s16, 1
        // Predicated region
        $region41: #{tpu_custom_call.1} parent=39 // pred_check
          %p256 = pneg %p54
        $region42: #{tpu_custom_call.1} parent=39 // pred_check_branch
          %258 = sbr.rel (%p256) target = $region44
        $region43: #{tpu_custom_call.1} parent=39 // pred_region
          %259 = dma.done [#allocation4], 64
        $region44: #{tpu_custom_call.1} parent=39 // pred_fallthru
          _
        // Predicated region
        $region45: #{tpu_custom_call.1} parent=39 // pred_check
          %p260 = pneg %p75
        $region46: #{tpu_custom_call.1} parent=39 // pred_check_branch
          %262 = sbr.rel (%p260) target = $region48
        $region47: #{tpu_custom_call.1} parent=39 // pred_region
          %263 = dma.done [#allocation7], 1024
        $region48: #{tpu_custom_call.1} parent=39 // pred_fallthru
          _
        %s264 = sand.u32 %s21, 1
        %s265 = scalar_lea.sflag [#allocation4], %s264
        %s266 = sand.u32 %s88, 1
        %s267 = smul.addr %s266, 64
        %s268 = scalar_lea.vmem [#allocation8], %s267
        // Predicated region
        $region49: #{tpu_custom_call.1} parent=39 // pred_check
          %p269 = pneg %p101
        $region50: #{tpu_custom_call.1} parent=39 // pred_check_branch
          %271 = sbr.rel (%p269) target = $region52
        $region51: #{tpu_custom_call.1} parent=39 // pred_region
          %272 = dma.done %s265, 1024
        $region52: #{tpu_custom_call.1} parent=39 // pred_fallthru
          _
        // Predicated region
        $region53: #{tpu_custom_call.1} parent=39 // pred_check
          %p273 = pneg %p143
        $region54: #{tpu_custom_call.1} parent=39 // pred_check_branch
          %275 = sbr.rel (%p273) target = $region56
        $region55: #{tpu_custom_call.1} parent=39 // pred_region
          %276 = dma.done [#allocation7], 128
        $region56: #{tpu_custom_call.1} parent=39 // pred_fallthru
          _
        %p277 = pneg %p54
        %p278 = pneg %p51
        %p279 = pneg %p75
        %p280 = pneg %p72
        %s281 = sand.u32 %s21, 1
        %s282 = scalar_lea.sflag [#allocation4], %s281
        %s283 = sand.u32 %s88, 1
        %s284 = smul.addr %s283, 64
        %s285 = scalar_lea.vmem [#allocation8], %s284
        %p286 = pneg %p101
        %p287 = pneg %p98
        %p288 = pneg %p122
        %p289 = pneg %p119
        %p290 = pneg %p143
        %p291 = pneg %p140
        %p292 = pneg %p169
        %p293 = pneg %p166
        %s294 = sand.u32 %s156, 1
        %s295 = scalar_lea.sflag [#allocation5], %s294
        %s296 = sand.u32 %s156, 1
        %s297 = smul.addr %s296, 8
        %s298 = scalar_lea.vmem [#allocation10], %s297
        %p300 = scmp.eq.s32.totalorder %s26, 0
        // Predicated region
        $region57: #{tpu_custom_call.1} parent=39 // pred_check
          %p301 = pneg %p300
        $region58: #{tpu_custom_call.1} parent=39 // pred_check_branch
          %303 = sbr.rel (%p301) target = $region60
        $region59: #{tpu_custom_call.1} parent=39 // pred_region
          %v304 = vld [vmem:[#allocation3] sm:$0xf]
          %v305 = vld [vmem:[#allocation6] sm:$0xf]
          %v306 = vld [vmem:[#allocation6 + $0x4] sm:$0xf]
          %v307 = vld [vmem:[#allocation6 + $0x8] sm:$0xf]
          %v308 = vld [vmem:[#allocation6 + $0xc] sm:$0xf]
          %v309 = vld [vmem:[#allocation6 + $0x10] sm:$0xf]
          %v310 = vld [vmem:[#allocation6 + $0x14] sm:$0xf]
          %v311 = vld [vmem:[#allocation6 + $0x18] sm:$0xf]
          %v312 = vld [vmem:[#allocation6 + $0x1c] sm:$0xf]
          %v313 = vld [vmem:[#allocation6 + $0x20] sm:$0xf]
          %v314 = vld [vmem:[#allocation6 + $0x24] sm:$0xf]
          %v315 = vld [vmem:[#allocation6 + $0x28] sm:$0xf]
          %v316 = vld [vmem:[#allocation6 + $0x2c] sm:$0xf]
          %v317 = vld [vmem:[#allocation6 + $0x30] sm:$0xf]
          %v318 = vld [vmem:[#allocation6 + $0x34] sm:$0xf]
          %v319 = vld [vmem:[#allocation6 + $0x38] sm:$0xf]
          %v320 = vld [vmem:[#allocation6 + $0x3c] sm:$0xf]
          %v337 = vunpack.c.l.b16 %v305
          %v338 = vunpack.c.l.b16 %v306
          %v339 = vunpack.c.l.b16 %v307
          %v340 = vunpack.c.l.b16 %v308
          %v341 = vunpack.c.l.b16 %v309
          %v342 = vunpack.c.l.b16 %v310
          %v343 = vunpack.c.l.b16 %v311
          %v344 = vunpack.c.l.b16 %v312
          %v345 = vunpack.c.l.b16 %v313
          %v346 = vunpack.c.l.b16 %v314
          %v347 = vunpack.c.l.b16 %v315
          %v348 = vunpack.c.l.b16 %v316
          %v349 = vunpack.c.l.b16 %v317
          %v350 = vunpack.c.l.b16 %v318
          %v351 = vunpack.c.l.b16 %v319
          %v352 = vunpack.c.l.b16 %v320
          %v353 = vpack.c.b16 %v338, %v337
          %v354 = vpack.c.b16 %v340, %v339
          %v355 = vpack.c.b16 %v342, %v341
          %v356 = vpack.c.b16 %v344, %v343
          %v357 = vpack.c.b16 %v346, %v345
          %v358 = vpack.c.b16 %v348, %v347
          %v359 = vpack.c.b16 %v350, %v349
          %v360 = vpack.c.b16 %v352, %v351
          %369 = vmatprep.subr.bf16.mxu0 0
          %370 = vmatpush1.bf16.msra.mxu0 %v360
          %371 = vmatprep.subr.bf16.mxu0 0
          %372 = vmatpush1.bf16.msra.mxu0 %v359
          %373 = vmatprep.subr.bf16.mxu0 0
          %374 = vmatpush1.bf16.msra.mxu0 %v358
          %375 = vmatprep.subr.bf16.mxu0 0
          %376 = vmatpush1.bf16.msra.mxu0 %v357
          %377 = vmatprep.subr.bf16.mxu0 0
          %378 = vmatpush1.bf16.msra.mxu0 %v356
          %379 = vmatprep.subr.bf16.mxu0 0
          %380 = vmatpush1.bf16.msra.mxu0 %v355
          %381 = vmatprep.subr.bf16.mxu0 0
          %382 = vmatpush1.bf16.msra.mxu0 %v354
          %383 = vmatprep.subr.bf16.mxu0 0
          %384 = vmatpush1.bf16.msra.mxu0 %v353
          %385 = vmatprep.subr.bf16.mxu0 0
          %386 = vmatpush2.bf16.msra.mxu0 0
          %387 = vmatprep.subr.bf16.mxu0 0
          %388 = vmatpush2.bf16.msra.mxu0 0
          %389 = vmatprep.subr.bf16.mxu0 0
          %390 = vmatpush2.bf16.msra.mxu0 0
          %391 = vmatprep.subr.bf16.mxu0 0
          %392 = vmatpush2.bf16.msra.mxu0 0
          %393 = vmatprep.subr.bf16.mxu0 0
          %394 = vmatpush2.bf16.msra.mxu0 0
          %395 = vmatprep.subr.bf16.mxu0 0
          %396 = vmatpush2.bf16.msra.mxu0 0
          %397 = vmatprep.subr.bf16.mxu0 0
          %398 = vmatpush2.bf16.msra.mxu0 0
          %399 = vmatprep.subr.bf16.mxu0 0
          %400 = vmatpush2.bf16.msra.mxu0 0
          %401 = vmatprep.mubr.bf16.mxu0 0
          %402 = vmatmul.mubr.bf16.gmra.mxu0 %v304
          %v403 = vpop.f32.mrf.mxu0
          %v404 = vadd.f32 0.0, %v403
          %v405 = vpop.f32.mrf.mxu0
          %v406 = vpop.f32.mrf.mxu0
          %v407 = vpop.f32.mrf.mxu0
          %408 = vdwg.mxu0
          %409 = vst [vmem:[#allocation2] sm:$0xff] %v404
        $region60: #{tpu_custom_call.1} parent=39 // pred_fallthru
          _
        %s410 = scalar_lea.vmem %s3, %s26
        %v411 = vld [vmem:[%s410] sm:$0x1]
        %v412 = vld [vmem:[#allocation2] sm:$0xff]
        %v413 = vpack.c.bf16 %v412, %v412
        %v414 = vld [vmem:[%s268] sm:$0xf]
        %v415 = vld [vmem:[%s268 + $0x4] sm:$0xf]
        %v416 = vld [vmem:[%s268 + $0x8] sm:$0xf]
        %v417 = vld [vmem:[%s268 + $0xc] sm:$0xf]
        %v418 = vld [vmem:[%s268 + $0x10] sm:$0xf]
        %v419 = vld [vmem:[%s268 + $0x14] sm:$0xf]
        %v420 = vld [vmem:[%s268 + $0x18] sm:$0xf]
        %v421 = vld [vmem:[%s268 + $0x1c] sm:$0xf]
        %v422 = vld [vmem:[%s268 + $0x20] sm:$0xf]
        %v423 = vld [vmem:[%s268 + $0x24] sm:$0xf]
        %v424 = vld [vmem:[%s268 + $0x28] sm:$0xf]
        %v425 = vld [vmem:[%s268 + $0x2c] sm:$0xf]
        %v426 = vld [vmem:[%s268 + $0x30] sm:$0xf]
        %v427 = vld [vmem:[%s268 + $0x34] sm:$0xf]
        %v428 = vld [vmem:[%s268 + $0x38] sm:$0xf]
        %v429 = vld [vmem:[%s268 + $0x3c] sm:$0xf]
        %v430 = vlaneseq
        %v431 = vshrl.u32 %v430, 7
        %v432 = vsub.s32 0, %v431
        %v433 = vrot.slane %v411, %v432
        %v450 = vunpack.c.l.b16 %v414
        %v451 = vunpack.c.l.b16 %v415
        %v452 = vunpack.c.l.b16 %v416
        %v453 = vunpack.c.l.b16 %v417
        %v454 = vunpack.c.l.b16 %v418
        %v455 = vunpack.c.l.b16 %v419
        %v456 = vunpack.c.l.b16 %v420
        %v457 = vunpack.c.l.b16 %v421
        %v458 = vunpack.c.l.b16 %v422
        %v459 = vunpack.c.l.b16 %v423
        %v460 = vunpack.c.l.b16 %v424
        %v461 = vunpack.c.l.b16 %v425
        %v462 = vunpack.c.l.b16 %v426
        %v463 = vunpack.c.l.b16 %v427
        %v464 = vunpack.c.l.b16 %v428
        %v465 = vunpack.c.l.b16 %v429
        %v466 = vpack.c.b16 %v451, %v450
        %v467 = vpack.c.b16 %v453, %v452
        %v468 = vpack.c.b16 %v455, %v454
        %v469 = vpack.c.b16 %v457, %v456
        %v470 = vpack.c.b16 %v459, %v458
        %v471 = vpack.c.b16 %v461, %v460
        %v472 = vpack.c.b16 %v463, %v462
        %v473 = vpack.c.b16 %v465, %v464
        %482 = vmatprep.subr.bf16.mxu0 0
        %483 = vmatpush1.bf16.msra.mxu0 %v473
        %484 = vmatprep.subr.bf16.mxu0 0
        %485 = vmatpush1.bf16.msra.mxu0 %v472
        %486 = vmatprep.subr.bf16.mxu0 0
        %487 = vmatpush1.bf16.msra.mxu0 %v471
        %488 = vmatprep.subr.bf16.mxu0 0
        %489 = vmatpush1.bf16.msra.mxu0 %v470
        %490 = vmatprep.subr.bf16.mxu0 0
        %491 = vmatpush1.bf16.msra.mxu0 %v469
        %492 = vmatprep.subr.bf16.mxu0 0
        %493 = vmatpush1.bf16.msra.mxu0 %v468
        %494 = vmatprep.subr.bf16.mxu0 0
        %495 = vmatpush1.bf16.msra.mxu0 %v467
        %496 = vmatprep.subr.bf16.mxu0 0
        %497 = vmatpush1.bf16.msra.mxu0 %v466
        %498 = vmatprep.subr.bf16.mxu0 0
        %499 = vmatpush2.bf16.msra.mxu0 0
        %500 = vmatprep.subr.bf16.mxu0 0
        %501 = vmatpush2.bf16.msra.mxu0 0
        %502 = vmatprep.subr.bf16.mxu0 0
        %503 = vmatpush2.bf16.msra.mxu0 0
        %504 = vmatprep.subr.bf16.mxu0 0
        %505 = vmatpush2.bf16.msra.mxu0 0
        %506 = vmatprep.subr.bf16.mxu0 0
        %507 = vmatpush2.bf16.msra.mxu0 0
        %508 = vmatprep.subr.bf16.mxu0 0
        %509 = vmatpush2.bf16.msra.mxu0 0
        %510 = vmatprep.subr.bf16.mxu0 0
        %511 = vmatpush2.bf16.msra.mxu0 0
        %512 = vmatprep.subr.bf16.mxu0 0
        %513 = vmatpush2.bf16.msra.mxu0 0
        %514 = vmatprep.mubr.bf16.mxu0 0
        %515 = vmatmul.mubr.bf16.gmra.mxu0 %v413
        %v516 = vpop.f32.mrf.mxu0
        %v517 = vadd.f32 %v433, %v516
        %v518 = vpop.f32.mrf.mxu0
        %v519 = vpop.f32.mrf.mxu0
        %v520 = vpop.f32.mrf.mxu0
        %521 = vdwg.mxu0
        %v522 = vmul.f32 %v517, %v517
        %v523 = vmul.f32 %v517, %v522
        %v524 = vmul.f32 %v523, 0.044715
        %v525 = vadd.f32 %v517, %v524
        %v526 = vmul.f32 %v525, 0.7978846
        %v527 = vtanh.pop %v526
        %v528 = vadd.f32 %v527, 1.0
        %v529 = vmul.f32 %v528, 0.5
        %v530 = vmul.f32 %v517, %v529
        %v531 = vadd.f32 %v530, %v412
        %532 = vst [vmem:[#allocation2] sm:$0xff] %v531
        %p533 = scmp.eq.s32.totalorder %s26, 1
        // Predicated region
        $region61: #{tpu_custom_call.1} parent=39 // pred_check
          %p534 = pneg %p533
        $region62: #{tpu_custom_call.1} parent=39 // pred_check_branch
          %536 = sbr.rel (%p534) target = $region64
        $region63: #{tpu_custom_call.1} parent=39 // pred_region
          %v537 = vld [vmem:[#allocation9] sm:$0xff]
          %v538 = vld [vmem:[#allocation2] sm:$0xff]
          %vm539 = vcmask 64512
          %v541 = vsel %vm539, %v537, 0
          %543 = vmatprep.subr.mxu0 0.0
          %544 = vmatpush1.msra.mxu0 0.0
          %545 = vmatprep.subr.mxu0 0.0
          %546 = vmatpush1.msra.mxu0 0.0
          %547 = vmatprep.subr.mxu0 0.0
          %548 = vmatpush1.msra.mxu0 0.0
          %549 = vmatprep.subr.mxu0 0.0
          %550 = vmatpush1.msra.mxu0 0.0
          %551 = vmatprep.subr.mxu0 0.0
          %552 = vmatpush1.msra.mxu0 0.0
          %553 = vmatprep.subr.mxu0 0.0
          %554 = vmatpush1.msra.mxu0 0.0
          %555 = vmatprep.subr.mxu0 0.0
          %556 = vmatpush1.msra.mxu0 0.0
          %557 = vmatprep.subr.mxu0 0.0
          %558 = vmatpush1.msra.mxu0 0.0
          %559 = vmatprep.subr.mxu0 0.0
          %560 = vmatpush1.msra.mxu0 0.0
          %561 = vmatprep.subr.mxu0 0.0
          %562 = vmatpush1.msra.mxu0 0.0
          %563 = vmatprep.subr.mxu0 0.0
          %564 = vmatpush1.msra.mxu0 0.0
          %565 = vmatprep.subr.mxu0 0.0
          %566 = vmatpush1.msra.mxu0 0.0
          %567 = vmatprep.subr.mxu0 0.0
          %568 = vmatpush1.msra.mxu0 0.0
          %569 = vmatprep.subr.mxu0 0.0
          %570 = vmatpush1.msra.mxu0 0.0
          %571 = vmatprep.subr.mxu0 0.0
          %572 = vmatpush1.msra.mxu0 0.0
          %573 = vmatprep.subr.mxu0 0.0
          %574 = vmatpush1.msra.mxu0 %v538
          %575 = vmatprep.subr.mxu0 0.0
          %576 = vmatpush2.msra.mxu0 0.0
          %577 = vmatprep.subr.mxu0 0.0
          %578 = vmatpush2.msra.mxu0 0.0
          %579 = vmatprep.subr.mxu0 0.0
          %580 = vmatpush2.msra.mxu0 0.0
          %581 = vmatprep.subr.mxu0 0.0
          %582 = vmatpush2.msra.mxu0 0.0
          %583 = vmatprep.subr.mxu0 0.0
          %584 = vmatpush2.msra.mxu0 0.0
          %585 = vmatprep.subr.mxu0 0.0
          %586 = vmatpush2.msra.mxu0 0.0
          %587 = vmatprep.subr.mxu0 0.0
          %588 = vmatpush2.msra.mxu0 0.0
          %589 = vmatprep.subr.mxu0 0.0
          %590 = vmatpush2.msra.mxu0 0.0
          %591 = vmatprep.subr.mxu0 0.0
          %592 = vmatpush2.msra.mxu0 0.0
          %593 = vmatprep.subr.mxu0 0.0
          %594 = vmatpush2.msra.mxu0 0.0
          %595 = vmatprep.subr.mxu0 0.0
          %596 = vmatpush2.msra.mxu0 0.0
          %597 = vmatprep.subr.mxu0 0.0
          %598 = vmatpush2.msra.mxu0 0.0
          %599 = vmatprep.subr.mxu0 0.0
          %600 = vmatpush2.msra.mxu0 0.0
          %601 = vmatprep.subr.mxu0 0.0
          %602 = vmatpush2.msra.mxu0 0.0
          %603 = vmatprep.subr.mxu0 0.0
          %604 = vmatpush2.msra.mxu0 0.0
          %605 = vmatprep.subr.mxu0 0.0
          %606 = vmatpush2.msra.mxu0 0.0
          %607 = vmatprep.mubr.f32.mxu0 0.0
          %608 = vmatmul.mubr.f32.gmra.mxu0 %v541
          %v609 = vpop.f32.mrf.mxu0
          %v610 = vadd.f32 0.0, %v609
          %v611 = vpop.f32.mrf.mxu0
          %612 = vdwg.mxu0
          %613 = vst [vmem:[%s298] sm:$0xff] %v610
        $region64: #{tpu_custom_call.1} parent=39 // pred_fallthru
          _
        %s614 = sand.u32 %s156, 1
        %s615 = scalar_lea.sflag [#allocation5], %s614
        %s616 = sand.u32 %s156, 1
        %s617 = smul.addr %s616, 8
        %s618 = scalar_lea.vmem [#allocation10], %s617
        // Predicated region
        $region65: #{tpu_custom_call.1} parent=39 // pred_check
          %p619 = pneg %p166
        $region66: #{tpu_custom_call.1} parent=39 // pred_check_branch
          %621 = sbr.rel (%p619) target = $region68
        $region67: #{tpu_custom_call.1} parent=39 // pred_region
          %s623 = ssub.s32 128, 128
          %624 = vsyncadd %s615, %s623
          %s625 = smul.addr %s25, 128
          %s626 = scalar_lea.hbm %s5, %s625
          %s628 = sshll.u32 %s618, 4
          %s629 = int_to_ptr.vmem [resolvable:$true] %s628
          %631 = dma.vmem_to_hbm [thread:$0]  %s629, 128, %s626, %s615
        $region68: #{tpu_custom_call.1} parent=39 // pred_fallthru
          _
      $region40: #{tpu_custom_call.1} parent=5 // pred_fallthru
        _
      %p632 = scmp.le.s32.totalorder 2, %s16
      // Predicated region
      $region69: #{tpu_custom_call.1} parent=5 // pred_check
        %p633 = pneg %p632
      $region70: #{tpu_custom_call.1} parent=5 // pred_check_branch
        %635 = sbr.rel (%p633) target = $region72
      $region71: #{tpu_custom_call.1} parent=5 // pred_region
        %s636 = ssub.s32 %s16, 2
        // Predicated region
        $region73: #{tpu_custom_call.1} parent=71 // pred_check
          %p637 = pneg %p172
        $region74: #{tpu_custom_call.1} parent=71 // pred_check_branch
          %639 = sbr.rel (%p637) target = $region76
        $region75: #{tpu_custom_call.1} parent=71 // pred_region
          %s640 = sand.u32 %s157, 1
          %s641 = scalar_lea.sflag [#allocation5], %s640
          %s642 = sand.u32 %s157, 1
          %s643 = smul.addr %s642, 8
          %s644 = scalar_lea.vmem [#allocation10], %s643
          %645 = dma.done %s641, 128
        $region76: #{tpu_custom_call.1} parent=71 // pred_fallthru
          _
      $region72: #{tpu_custom_call.1} parent=5 // pred_fallthru
        _
    $region6: #{tpu_custom_call.1} parent=1 // loop_footer
      %s20 = sadd.s32 1, %s16
    $region7: #{tpu_custom_call.1} parent=1 // loop_footer_branch
      %15 = sbr.rel target = $region3
    $region8: #{tpu_custom_call.1} parent=1 // loop_exit
      _
    %646 = vsyncpa [#allocation4], 1
    %s647 = scalar_lea.sflag [#allocation4], 1
    %648 = vsyncpa %s647, 1
    %649 = vsyncpa [#allocation7], 1
    %650 = vsyncpa [#allocation5], 1
    %s651 = scalar_lea.sflag [#allocation5], 1
    %652 = vsyncpa %s651, 1

// kernel: tpu_custom_call.1
$region0: #{tpu_custom_call.1}
  #allocation0 [shape = 'u32[]', space=smem, size = 0x4, offset = 0x4, fixed_abs, tag = 'smem constant byte address 0x4 - core index']
  #allocation1 [shape = 'u32[144,128]{1,0:T(1,128)}', space=vmem, size = 0x12000, scoped, tag = 'internal scratch']
  #allocation2 [shape = 'f32[8,128]{1,0:T(8,128)}', space=vmem, size = 0x1000, scoped, tag = 'scratch operand']
  %s0 = inlined_call_operand.hbm [shape: bf16[16,128], index: 0, kind: input, shape index: {}]
  %s1 = inlined_call_operand.hbm [shape: bf16[128,128], index: 1, kind: input, shape index: {}]
  %s2 = inlined_call_operand.hbm [shape: bf16[2,128,128], index: 2, kind: input, shape index: {}]
  %s3 = inlined_call_operand.vmem [shape: f32[2,128], index: 3, kind: input, shape index: {}]
  %s4 = inlined_call_operand.hbm [shape: f32[8,8], index: 4, kind: input, shape index: {}]
  %s5 = inlined_call_operand.hbm [shape: f32[16,128], index: 5, kind: output, shape index: {}]
  %s6 = sld [smem:[#allocation0]]
  $region77: #{tpu_custom_call.1} parent=0
    _
  %s8 = ssub.s32 1, %s6
  %s9 = scalar_select 0, %s8, %s6
  $region1: #{tpu_custom_call.1} parent=0
    #allocation3 [shape = 'u8[4096]{0}', space=vmem, size = 0x1000, scoped, tag = 'input window, operand 0']
    #allocation4 [shape = 's32[2]{0}', space=sflag, size = 0x8, scoped, tag = 'scoped memory for tpu_custom_call.1']
    #allocation5 [shape = 's32[2]{0}', space=sflag, size = 0x8, scoped, tag = 'scoped memory for tpu_custom_call.1']
    #allocation6 [shape = 'u8[32768]{0}', space=vmem, size = 0x8000, scoped, tag = 'input window, operand 1, single buffered']
    #allocation7 [shape = 's32[1]{0}', space=sflag, size = 0x4, scoped, tag = 'scoped memory for tpu_custom_call.1']
    #allocation8 [shape = 'u8[65536]{0}', space=vmem, size = 0x10000, scoped, tag = 'input window, operand 2']
    #allocation9 [shape = 'u8[4096]{0}', space=vmem, size = 0x1000, scoped, tag = 'input window, operand 4, single buffered']
    #allocation10 [shape = 'u8[8192]{0}', space=vmem, size = 0x2000, scoped, tag = 'output window, operand 0']
    %10 = vsyncpa [#allocation4], 0
    %s11 = scalar_lea.sflag [#allocation4], 1
    %12 = vsyncpa %s11, 0
    %13 = vsyncpa [#allocation7], 0
    %14 = vsyncpa [#allocation5], 0
    %s15 = scalar_lea.sflag [#allocation5], 1
    %16 = vsyncpa %s15, 0
    loop: start=0, step=1, limit=6
    $region2: #{tpu_custom_call.1} parent=1 // loop_pre_header
      _
    $region3: #{tpu_custom_call.1} parent=1 // loop_header
      %s18 = sphi 0, %s22
      %p19 = scmp.ge.s32.totalorder %s18, 6
      %s25 = sphi 0, %s37
      %s26 = sphi 0, %s33
      %s27 = sphi 0, %s25
      %s28 = sphi 0, %s26
      %s29 = sphi 0, %s27
      %s30 = sphi 0, %s28
      %s40 = sphi 0, %s42
      %s43 = sphi 0, %s40
      %s44 = sphi 0, %s43
      %s60 = sphi 0, %s44
      %s64 = sphi 0, %s64
      %s66 = sphi 0, %s64
      %s67 = sphi 0, %s66
      %s81 = sphi 0, %s67
      %s87 = sphi 0, %s89
      %s90 = sphi 0, %s87
      %s91 = sphi 0, %s90
      %s107 = sphi 0, %s91
      %s111 = sphi 0, %s111
      %s113 = sphi 0, %s111
      %s114 = sphi 0, %s113
      %s128 = sphi 0, %s114
      %s132 = sphi 0, %s132
      %s134 = sphi 0, %s132
      %s135 = sphi 0, %s134
      %s149 = sphi 0, %s135
      %s155 = sphi 0, %s157
      %s158 = sphi 0, %s155
      %s159 = sphi 0, %s158
      %s175 = sphi 0, %s159
    $region4: #{tpu_custom_call.1} parent=1 // loop_header_branch
      %21 = sbr.rel (%p19) target = $region8
    $region5: #{tpu_custom_call.1} parent=1 // loop_body
      %s23 = ssub.s32 %s18, 1
      %s24 = ssub.s32 %s18, 2
      %s31 = sadd.s32 1, %s26
      %p32 = scmp.ge.s32.totalorder %s31, 2
      %s33 = scalar_select %p32, 0, %s31
      %s34 = sadd.s32 1, %s25
      %s35 = scalar_select %p32, %s34, %s25
      %p36 = scmp.ge.s32.totalorder %s35, 2
      %s37 = scalar_select %p36, 0, %s35
      %s38 = ssub.s32 %s25, %s37
      %p39 = scmp.eq.s32.totalorder %s38, 0
      %s41 = sadd.s32 %s40, 1
      %s42 = scalar_select %p39, %s40, %s41
      %p45 = pneg %p39
      %p46 = scmp.eq.s32.totalorder %s18, 3
      %p47 = por %p45, %p46
      %p48 = scmp.ne.s32.totalorder %s40, %s43
      %p49 = scmp.eq.s32.totalorder %s18, 0
      %p50 = por %p48, %p49
      %p51 = scmp.ne.s32.totalorder %s40, %s43
      %p52 = scmp.eq.s32.totalorder %s23, 3
      %p53 = por %p51, %p52
      %p54 = scmp.ne.s32.totalorder %s43, %s44
      %p55 = scmp.eq.s32.totalorder %s23, 0
      %p56 = por %p54, %p55
      %p57 = scmp.ne.s32.totalorder %s43, %s44
      %p58 = scmp.eq.s32.totalorder %s24, 3
      %p59 = por %p57, %p58
      %p61 = scmp.ne.s32.totalorder %s44, %s60
      %p62 = scmp.eq.s32.totalorder %s24, 0
      %p63 = por %p61, %p62
      %s65 = sadd.s32 %s64, 1
      %p68 = scmp.eq.s32.totalorder %s18, 3
      %p69 = scmp.ne.s32.totalorder %s64, %s66
      %p70 = scmp.eq.s32.totalorder %s18, 0
      %p71 = por %p69, %p70
      %p72 = scmp.ne.s32.totalorder %s64, %s66
      %p73 = scmp.eq.s32.totalorder %s23, 3
      %p74 = por %p72, %p73
      %p75 = scmp.ne.s32.totalorder %s66, %s67
      %p76 = scmp.eq.s32.totalorder %s23, 0
      %p77 = por %p75, %p76
      %p78 = scmp.ne.s32.totalorder %s66, %s67
      %p79 = scmp.eq.s32.totalorder %s24, 3
      %p80 = por %p78, %p79
      %p82 = scmp.ne.s32.totalorder %s67, %s81
      %p83 = scmp.eq.s32.totalorder %s24, 0
      %p84 = por %p82, %p83
      %s85 = ssub.s32 %s26, %s33
      %p86 = scmp.eq.s32.totalorder %s85, 0
      %s88 = sadd.s32 %s87, 1
      %s89 = scalar_select %p86, %s87, %s88
      %p92 = pneg %p86
      %p93 = scmp.eq.s32.totalorder %s18, 3
      %p94 = por %p92, %p93
      %p95 = scmp.ne.s32.totalorder %s87, %s90
      %p96 = scmp.eq.s32.totalorder %s18, 0
      %p97 = por %p95, %p96
      %p98 = scmp.ne.s32.totalorder %s87, %s90
      %p99 = scmp.eq.s32.totalorder %s23, 3
      %p100 = por %p98, %p99
      %p101 = scmp.ne.s32.totalorder %s90, %s91
      %p102 = scmp.eq.s32.totalorder %s23, 0
      %p103 = por %p101, %p102
      %p104 = scmp.ne.s32.totalorder %s90, %s91
      %p105 = scmp.eq.s32.totalorder %s24, 3
      %p106 = por %p104, %p105
      %p108 = scmp.ne.s32.totalorder %s91, %s107
      %p109 = scmp.eq.s32.totalorder %s24, 0
      %p110 = por %p108, %p109
      %s112 = sadd.s32 %s111, 1
      %p115 = scmp.eq.s32.totalorder %s18, 3
      %p116 = scmp.ne.s32.totalorder %s111, %s113
      %p117 = scmp.eq.s32.totalorder %s18, 0
      %p118 = por %p116, %p117
      %p119 = scmp.ne.s32.totalorder %s111, %s113
      %p120 = scmp.eq.s32.totalorder %s23, 3
      %p121 = por %p119, %p120
      %p122 = scmp.ne.s32.totalorder %s113, %s114
      %p123 = scmp.eq.s32.totalorder %s23, 0
      %p124 = por %p122, %p123
      %p125 = scmp.ne.s32.totalorder %s113, %s114
      %p126 = scmp.eq.s32.totalorder %s24, 3
      %p127 = por %p125, %p126
      %p129 = scmp.ne.s32.totalorder %s114, %s128
      %p130 = scmp.eq.s32.totalorder %s24, 0
      %p131 = por %p129, %p130
      %s133 = sadd.s32 %s132, 1
      %p136 = scmp.eq.s32.totalorder %s18, 3
      %p137 = scmp.ne.s32.totalorder %s132, %s134
      %p138 = scmp.eq.s32.totalorder %s18, 0
      %p139 = por %p137, %p138
      %p140 = scmp.ne.s32.totalorder %s132, %s134
      %p141 = scmp.eq.s32.totalorder %s23, 3
      %p142 = por %p140, %p141
      %p143 = scmp.ne.s32.totalorder %s134, %s135
      %p144 = scmp.eq.s32.totalorder %s23, 0
      %p145 = por %p143, %p144
      %p146 = scmp.ne.s32.totalorder %s134, %s135
      %p147 = scmp.eq.s32.totalorder %s24, 3
      %p148 = por %p146, %p147
      %p150 = scmp.ne.s32.totalorder %s135, %s149
      %p151 = scmp.eq.s32.totalorder %s24, 0
      %p152 = por %p150, %p151
      %s153 = ssub.s32 %s25, %s37
      %p154 = scmp.eq.s32.totalorder %s153, 0
      %s156 = sadd.s32 %s155, 1
      %s157 = scalar_select %p154, %s155, %s156
      %p160 = pneg %p154
      %p161 = scmp.eq.s32.totalorder %s18, 3
      %p162 = por %p160, %p161
      %p163 = scmp.ne.s32.totalorder %s155, %s158
      %p164 = scmp.eq.s32.totalorder %s18, 0
      %p165 = por %p163, %p164
      %p166 = scmp.ne.s32.totalorder %s155, %s158
      %p167 = scmp.eq.s32.totalorder %s23, 3
      %p168 = por %p166, %p167
      %p169 = scmp.ne.s32.totalorder %s158, %s159
      %p170 = scmp.eq.s32.totalorder %s23, 0
      %p171 = por %p169, %p170
      %p172 = scmp.ne.s32.totalorder %s158, %s159
      %p173 = scmp.eq.s32.totalorder %s24, 3
      %p174 = por %p172, %p173
      %p176 = scmp.ne.s32.totalorder %s159, %s175
      %p177 = scmp.eq.s32.totalorder %s24, 0
      %p178 = por %p176, %p177
      %p179 = scmp.le.s32.totalorder 1, %s18
      %p180 = scmp.lt.s32.totalorder %s18, 5
      %p181 = pnand %p179, %p180
      %p182 = pneg %p181
      // Predicated region
      $region9: #{tpu_custom_call.1} parent=5 // pred_check
        _
      $region10: #{tpu_custom_call.1} parent=5 // pred_check_branch
        %184 = sbr.rel (%p181) target = $region12
      $region11: #{tpu_custom_call.1} parent=5 // pred_region
        %s185 = ssub.s32 %s18, 1
        // Predicated region
        $region13: #{tpu_custom_call.1} parent=11 // pred_check
          %p186 = pneg %p77
        $region14: #{tpu_custom_call.1} parent=11 // pred_check_branch
          %188 = sbr.rel (%p186) target = $region16
        $region15: #{tpu_custom_call.1} parent=11 // pred_region
          %s190 = ssub.s32 1024, 1024
          %191 = vsyncadd [#allocation7], %s190
          %s192 = sshll.u32 [#allocation6], 4
          %s193 = int_to_ptr.vmem [resolvable:$true] %s192
          %198 = dma.hbm_to_vmem [thread:$0]  %s1, 1024, %s193, [#allocation7], 64, 64, 4
        $region16: #{tpu_custom_call.1} parent=11 // pred_fallthru
          _
        // Predicated region
        $region17: #{tpu_custom_call.1} parent=11 // pred_check
          %p199 = pneg %p124
        $region18: #{tpu_custom_call.1} parent=11 // pred_check_branch
          %201 = sbr.rel (%p199) target = $region20
        $region19: #{tpu_custom_call.1} parent=11 // pred_region
          _
        $region20: #{tpu_custom_call.1} parent=11 // pred_fallthru
          _
        // Predicated region
        $region21: #{tpu_custom_call.1} parent=11 // pred_check
          %p202 = pneg %p145
        $region22: #{tpu_custom_call.1} parent=11 // pred_check_branch
          %204 = sbr.rel (%p202) target = $region24
        $region23: #{tpu_custom_call.1} parent=11 // pred_region
          %s206 = ssub.s32 128, 128
          %207 = vsyncadd [#allocation7], %s206
          %s209 = sshll.u32 [#allocation9], 4
          %s210 = int_to_ptr.vmem [resolvable:$true] %s209
          %212 = dma.hbm_to_vmem [thread:$0]  %s4, 128, %s210, [#allocation7]
        $region24: #{tpu_custom_call.1} parent=11 // pred_fallthru
          _
      $region12: #{tpu_custom_call.1} parent=5 // pred_fallthru
        _
      %p213 = scmp.lt.s32.totalorder %s18, 4
      // Predicated region
      $region25: #{tpu_custom_call.1} parent=5 // pred_check
        %p214 = pneg %p213
      $region26: #{tpu_custom_call.1} parent=5 // pred_check_branch
        %216 = sbr.rel (%p214) target = $region28
      $region27: #{tpu_custom_call.1} parent=5 // pred_region
        // Predicated region
        $region29: #{tpu_custom_call.1} parent=27 // pred_check
          %p217 = pneg %p50
        $region30: #{tpu_custom_call.1} parent=27 // pred_check_branch
          %219 = sbr.rel (%p217) target = $region32
        $region31: #{tpu_custom_call.1} parent=27 // pred_region
          %s220 = sand.u32 %s18, 1
          %s221 = scalar_lea.sflag [#allocation4], %s220
          %s222 = sand.u32 %s40, 1
          %s223 = smul.addr %s222, 4
          %s224 = scalar_lea.vmem [#allocation3], %s223
          %s226 = ssub.s32 64, 64
          %227 = vsyncadd %s221, %s226
          %s228 = smul.addr %s25, 64
          %s229 = scalar_lea.hbm %s0, %s228
          %s231 = sshll.u32 %s224, 4
          %s232 = int_to_ptr.vmem [resolvable:$true] %s231
          %234 = dma.hbm_to_vmem [thread:$0]  %s229, 64, %s232, %s221
        $region32: #{tpu_custom_call.1} parent=27 // pred_fallthru
          _
        // Predicated region
        $region33: #{tpu_custom_call.1} parent=27 // pred_check
          %p235 = pneg %p97
        $region34: #{tpu_custom_call.1} parent=27 // pred_check_branch
          %237 = sbr.rel (%p235) target = $region36
        $region35: #{tpu_custom_call.1} parent=27 // pred_region
          %s238 = sand.u32 %s18, 1
          %s239 = scalar_lea.sflag [#allocation4], %s238
          %s240 = sand.u32 %s87, 1
          %s241 = smul.addr %s240, 64
          %s242 = scalar_lea.vmem [#allocation8], %s241
          %s244 = ssub.s32 1024, 1024
          %245 = vsyncadd %s239, %s244
          %s246 = smul.addr %s26, 16
          %s247 = smul.addr %s246, 64
          %s248 = scalar_lea.hbm %s2, %s247
          %s249 = sshll.u32 %s242, 4
          %s250 = int_to_ptr.vmem [resolvable:$true] %s249
          %255 = dma.hbm_to_vmem [thread:$0]  %s248, 1024, %s250, %s239, 64, 64, 4
        $region36: #{tpu_custom_call.1} parent=27 // pred_fallthru
          _
      $region28: #{tpu_custom_call.1} parent=5 // pred_fallthru
        _
      %p256 = scmp.le.s32.totalorder 1, %s18
      %p257 = scmp.lt.s32.totalorder %s18, 5
      %p258 = pnand %p256, %p257
      %p259 = pneg %p258
      // Predicated region
      $region37: #{tpu_custom_call.1} parent=5 // pred_check
        _
      $region38: #{tpu_custom_call.1} parent=5 // pred_check_branch
        %261 = sbr.rel (%p258) target = $region40
      $region39: #{tpu_custom_call.1} parent=5 // pred_region
        %s262 = ssub.s32 %s18, 1
        %s263 = sand.u32 %s23, 1
        %s264 = scalar_lea.sflag [#allocation4], %s263
        %s265 = sand.u32 %s43, 1
        %s266 = smul.addr %s265, 4
        %s267 = scalar_lea.vmem [#allocation3], %s266
        // Predicated region
        $region41: #{tpu_custom_call.1} parent=39 // pred_check
          %p268 = pneg %p56
        $region42: #{tpu_custom_call.1} parent=39 // pred_check_branch
          %270 = sbr.rel (%p268) target = $region44
        $region43: #{tpu_custom_call.1} parent=39 // pred_region
          %271 = dma.done %s264, 64
        $region44: #{tpu_custom_call.1} parent=39 // pred_fallthru
          _
        // Predicated region
        $region45: #{tpu_custom_call.1} parent=39 // pred_check
          %p272 = pneg %p77
        $region46: #{tpu_custom_call.1} parent=39 // pred_check_branch
          %274 = sbr.rel (%p272) target = $region48
        $region47: #{tpu_custom_call.1} parent=39 // pred_region
          %275 = dma.done [#allocation7], 1024
        $region48: #{tpu_custom_call.1} parent=39 // pred_fallthru
          _
        %s276 = sand.u32 %s23, 1
        %s277 = scalar_lea.sflag [#allocation4], %s276
        %s278 = sand.u32 %s90, 1
        %s279 = smul.addr %s278, 64
        %s280 = scalar_lea.vmem [#allocation8], %s279
        // Predicated region
        $region49: #{tpu_custom_call.1} parent=39 // pred_check
          %p281 = pneg %p103
        $region50: #{tpu_custom_call.1} parent=39 // pred_check_branch
          %283 = sbr.rel (%p281) target = $region52
        $region51: #{tpu_custom_call.1} parent=39 // pred_region
          %284 = dma.done %s277, 1024
        $region52: #{tpu_custom_call.1} parent=39 // pred_fallthru
          _
        // Predicated region
        $region53: #{tpu_custom_call.1} parent=39 // pred_check
          %p285 = pneg %p145
        $region54: #{tpu_custom_call.1} parent=39 // pred_check_branch
          %287 = sbr.rel (%p285) target = $region56
        $region55: #{tpu_custom_call.1} parent=39 // pred_region
          %288 = dma.done [#allocation7], 128
        $region56: #{tpu_custom_call.1} parent=39 // pred_fallthru
          _
        %s289 = sand.u32 %s23, 1
        %s290 = scalar_lea.sflag [#allocation4], %s289
        %s291 = sand.u32 %s43, 1
        %s292 = smul.addr %s291, 4
        %s293 = scalar_lea.vmem [#allocation3], %s292
        %p294 = pneg %p56
        %p295 = pneg %p53
        %p296 = pneg %p77
        %p297 = pneg %p74
        %s298 = sand.u32 %s23, 1
        %s299 = scalar_lea.sflag [#allocation4], %s298
        %s300 = sand.u32 %s90, 1
        %s301 = smul.addr %s300, 64
        %s302 = scalar_lea.vmem [#allocation8], %s301
        %p303 = pneg %p103
        %p304 = pneg %p100
        %p305 = pneg %p124
        %p306 = pneg %p121
        %p307 = pneg %p145
        %p308 = pneg %p142
        %p309 = pneg %p171
        %p310 = pneg %p168
        %s311 = sand.u32 %s158, 1
        %s312 = scalar_lea.sflag [#allocation5], %s311
        %s313 = sand.u32 %s158, 1
        %s314 = smul.addr %s313, 8
        %s315 = scalar_lea.vmem [#allocation10], %s314
        %p317 = scmp.eq.s32.totalorder %s28, 0
        // Predicated region
        $region57: #{tpu_custom_call.1} parent=39 // pred_check
          %p318 = pneg %p317
        $region58: #{tpu_custom_call.1} parent=39 // pred_check_branch
          %320 = sbr.rel (%p318) target = $region60
        $region59: #{tpu_custom_call.1} parent=39 // pred_region
          %v321 = vld [vmem:[%s267] sm:$0xf]
          %v322 = vld [vmem:[#allocation6] sm:$0xf]
          %v323 = vld [vmem:[#allocation6 + $0x4] sm:$0xf]
          %v324 = vld [vmem:[#allocation6 + $0x8] sm:$0xf]
          %v325 = vld [vmem:[#allocation6 + $0xc] sm:$0xf]
          %v326 = vld [vmem:[#allocation6 + $0x10] sm:$0xf]
          %v327 = vld [vmem:[#allocation6 + $0x14] sm:$0xf]
          %v328 = vld [vmem:[#allocation6 + $0x18] sm:$0xf]
          %v329 = vld [vmem:[#allocation6 + $0x1c] sm:$0xf]
          %v330 = vld [vmem:[#allocation6 + $0x20] sm:$0xf]
          %v331 = vld [vmem:[#allocation6 + $0x24] sm:$0xf]
          %v332 = vld [vmem:[#allocation6 + $0x28] sm:$0xf]
          %v333 = vld [vmem:[#allocation6 + $0x2c] sm:$0xf]
          %v334 = vld [vmem:[#allocation6 + $0x30] sm:$0xf]
          %v335 = vld [vmem:[#allocation6 + $0x34] sm:$0xf]
          %v336 = vld [vmem:[#allocation6 + $0x38] sm:$0xf]
          %v337 = vld [vmem:[#allocation6 + $0x3c] sm:$0xf]
          %v354 = vunpack.c.l.b16 %v322
          %v355 = vunpack.c.l.b16 %v323
          %v356 = vunpack.c.l.b16 %v324
          %v357 = vunpack.c.l.b16 %v325
          %v358 = vunpack.c.l.b16 %v326
          %v359 = vunpack.c.l.b16 %v327
          %v360 = vunpack.c.l.b16 %v328
          %v361 = vunpack.c.l.b16 %v329
          %v362 = vunpack.c.l.b16 %v330
          %v363 = vunpack.c.l.b16 %v331
          %v364 = vunpack.c.l.b16 %v332
          %v365 = vunpack.c.l.b16 %v333
          %v366 = vunpack.c.l.b16 %v334
          %v367 = vunpack.c.l.b16 %v335
          %v368 = vunpack.c.l.b16 %v336
          %v369 = vunpack.c.l.b16 %v337
          %v370 = vpack.c.b16 %v355, %v354
          %v371 = vpack.c.b16 %v357, %v356
          %v372 = vpack.c.b16 %v359, %v358
          %v373 = vpack.c.b16 %v361, %v360
          %v374 = vpack.c.b16 %v363, %v362
          %v375 = vpack.c.b16 %v365, %v364
          %v376 = vpack.c.b16 %v367, %v366
          %v377 = vpack.c.b16 %v369, %v368
          %386 = vmatprep.subr.bf16.mxu0 0
          %387 = vmatpush1.bf16.msra.mxu0 %v377
          %388 = vmatprep.subr.bf16.mxu0 0
          %389 = vmatpush1.bf16.msra.mxu0 %v376
          %390 = vmatprep.subr.bf16.mxu0 0
          %391 = vmatpush1.bf16.msra.mxu0 %v375
          %392 = vmatprep.subr.bf16.mxu0 0
          %393 = vmatpush1.bf16.msra.mxu0 %v374
          %394 = vmatprep.subr.bf16.mxu0 0
          %395 = vmatpush1.bf16.msra.mxu0 %v373
          %396 = vmatprep.subr.bf16.mxu0 0
          %397 = vmatpush1.bf16.msra.mxu0 %v372
          %398 = vmatprep.subr.bf16.mxu0 0
          %399 = vmatpush1.bf16.msra.mxu0 %v371
          %400 = vmatprep.subr.bf16.mxu0 0
          %401 = vmatpush1.bf16.msra.mxu0 %v370
          %402 = vmatprep.subr.bf16.mxu0 0
          %403 = vmatpush2.bf16.msra.mxu0 0
          %404 = vmatprep.subr.bf16.mxu0 0
          %405 = vmatpush2.bf16.msra.mxu0 0
          %406 = vmatprep.subr.bf16.mxu0 0
          %407 = vmatpush2.bf16.msra.mxu0 0
          %408 = vmatprep.subr.bf16.mxu0 0
          %409 = vmatpush2.bf16.msra.mxu0 0
          %410 = vmatprep.subr.bf16.mxu0 0
          %411 = vmatpush2.bf16.msra.mxu0 0
          %412 = vmatprep.subr.bf16.mxu0 0
          %413 = vmatpush2.bf16.msra.mxu0 0
          %414 = vmatprep.subr.bf16.mxu0 0
          %415 = vmatpush2.bf16.msra.mxu0 0
          %416 = vmatprep.subr.bf16.mxu0 0
          %417 = vmatpush2.bf16.msra.mxu0 0
          %418 = vmatprep.mubr.bf16.mxu0 0
          %419 = vmatmul.mubr.bf16.gmra.mxu0 %v321
          %v420 = vpop.f32.mrf.mxu0
          %v421 = vadd.f32 0.0, %v420
          %v422 = vpop.f32.mrf.mxu0
          %v423 = vpop.f32.mrf.mxu0
          %v424 = vpop.f32.mrf.mxu0
          %425 = vdwg.mxu0
          %426 = vst [vmem:[#allocation2] sm:$0xff] %v421
        $region60: #{tpu_custom_call.1} parent=39 // pred_fallthru
          _
        %s427 = scalar_lea.vmem %s3, %s28
        %v428 = vld [vmem:[%s427] sm:$0x1]
        %v429 = vld [vmem:[#allocation2] sm:$0xff]
        %v430 = vpack.c.bf16 %v429, %v429
        %v431 = vld [vmem:[%s280] sm:$0xf]
        %v432 = vld [vmem:[%s280 + $0x4] sm:$0xf]
        %v433 = vld [vmem:[%s280 + $0x8] sm:$0xf]
        %v434 = vld [vmem:[%s280 + $0xc] sm:$0xf]
        %v435 = vld [vmem:[%s280 + $0x10] sm:$0xf]
        %v436 = vld [vmem:[%s280 + $0x14] sm:$0xf]
        %v437 = vld [vmem:[%s280 + $0x18] sm:$0xf]
        %v438 = vld [vmem:[%s280 + $0x1c] sm:$0xf]
        %v439 = vld [vmem:[%s280 + $0x20] sm:$0xf]
        %v440 = vld [vmem:[%s280 + $0x24] sm:$0xf]
        %v441 = vld [vmem:[%s280 + $0x28] sm:$0xf]
        %v442 = vld [vmem:[%s280 + $0x2c] sm:$0xf]
        %v443 = vld [vmem:[%s280 + $0x30] sm:$0xf]
        %v444 = vld [vmem:[%s280 + $0x34] sm:$0xf]
        %v445 = vld [vmem:[%s280 + $0x38] sm:$0xf]
        %v446 = vld [vmem:[%s280 + $0x3c] sm:$0xf]
        %v447 = vlaneseq
        %v448 = vshrl.u32 %v447, 7
        %v449 = vsub.s32 0, %v448
        %v450 = vrot.slane %v428, %v449
        %v467 = vunpack.c.l.b16 %v431
        %v468 = vunpack.c.l.b16 %v432
        %v469 = vunpack.c.l.b16 %v433
        %v470 = vunpack.c.l.b16 %v434
        %v471 = vunpack.c.l.b16 %v435
        %v472 = vunpack.c.l.b16 %v436
        %v473 = vunpack.c.l.b16 %v437
        %v474 = vunpack.c.l.b16 %v438
        %v475 = vunpack.c.l.b16 %v439
        %v476 = vunpack.c.l.b16 %v440
        %v477 = vunpack.c.l.b16 %v441
        %v478 = vunpack.c.l.b16 %v442
        %v479 = vunpack.c.l.b16 %v443
        %v480 = vunpack.c.l.b16 %v444
        %v481 = vunpack.c.l.b16 %v445
        %v482 = vunpack.c.l.b16 %v446
        %v483 = vpack.c.b16 %v468, %v467
        %v484 = vpack.c.b16 %v470, %v469
        %v485 = vpack.c.b16 %v472, %v471
        %v486 = vpack.c.b16 %v474, %v473
        %v487 = vpack.c.b16 %v476, %v475
        %v488 = vpack.c.b16 %v478, %v477
        %v489 = vpack.c.b16 %v480, %v479
        %v490 = vpack.c.b16 %v482, %v481
        %499 = vmatprep.subr.bf16.mxu0 0
        %500 = vmatpush1.bf16.msra.mxu0 %v490
        %501 = vmatprep.subr.bf16.mxu0 0
        %502 = vmatpush1.bf16.msra.mxu0 %v489
        %503 = vmatprep.subr.bf16.mxu0 0
        %504 = vmatpush1.bf16.msra.mxu0 %v488
        %505 = vmatprep.subr.bf16.mxu0 0
        %506 = vmatpush1.bf16.msra.mxu0 %v487
        %507 = vmatprep.subr.bf16.mxu0 0
        %508 = vmatpush1.bf16.msra.mxu0 %v486
        %509 = vmatprep.subr.bf16.mxu0 0
        %510 = vmatpush1.bf16.msra.mxu0 %v485
        %511 = vmatprep.subr.bf16.mxu0 0
        %512 = vmatpush1.bf16.msra.mxu0 %v484
        %513 = vmatprep.subr.bf16.mxu0 0
        %514 = vmatpush1.bf16.msra.mxu0 %v483
        %515 = vmatprep.subr.bf16.mxu0 0
        %516 = vmatpush2.bf16.msra.mxu0 0
        %517 = vmatprep.subr.bf16.mxu0 0
        %518 = vmatpush2.bf16.msra.mxu0 0
        %519 = vmatprep.subr.bf16.mxu0 0
        %520 = vmatpush2.bf16.msra.mxu0 0
        %521 = vmatprep.subr.bf16.mxu0 0
        %522 = vmatpush2.bf16.msra.mxu0 0
        %523 = vmatprep.subr.bf16.mxu0 0
        %524 = vmatpush2.bf16.msra.mxu0 0
        %525 = vmatprep.subr.bf16.mxu0 0
        %526 = vmatpush2.bf16.msra.mxu0 0
        %527 = vmatprep.subr.bf16.mxu0 0
        %528 = vmatpush2.bf16.msra.mxu0 0
        %529 = vmatprep.subr.bf16.mxu0 0
        %530 = vmatpush2.bf16.msra.mxu0 0
        %531 = vmatprep.mubr.bf16.mxu0 0
        %532 = vmatmul.mubr.bf16.gmra.mxu0 %v430
        %v533 = vpop.f32.mrf.mxu0
        %v534 = vadd.f32 %v450, %v533
        %v535 = vpop.f32.mrf.mxu0
        %v536 = vpop.f32.mrf.mxu0
        %v537 = vpop.f32.mrf.mxu0
        %538 = vdwg.mxu0
        %v539 = vmul.f32 %v534, %v534
        %v540 = vmul.f32 %v534, %v539
        %v541 = vmul.f32 %v540, 0.044715
        %v542 = vadd.f32 %v534, %v541
        %v543 = vmul.f32 %v542, 0.7978846
        %v544 = vtanh.pop %v543
        %v545 = vadd.f32 %v544, 1.0
        %v546 = vmul.f32 %v545, 0.5
        %v547 = vmul.f32 %v534, %v546
        %v548 = vadd.f32 %v547, %v429
        %549 = vst [vmem:[#allocation2] sm:$0xff] %v548
        %p550 = scmp.eq.s32.totalorder %s28, 1
        // Predicated region
        $region61: #{tpu_custom_call.1} parent=39 // pred_check
          %p551 = pneg %p550
        $region62: #{tpu_custom_call.1} parent=39 // pred_check_branch
          %553 = sbr.rel (%p551) target = $region64
        $region63: #{tpu_custom_call.1} parent=39 // pred_region
          %v554 = vld [vmem:[#allocation9] sm:$0xff]
          %v555 = vld [vmem:[#allocation2] sm:$0xff]
          %vm556 = vcmask 64512
          %v558 = vsel %vm556, %v554, 0
          %560 = vmatprep.subr.mxu0 0.0
          %561 = vmatpush1.msra.mxu0 0.0
          %562 = vmatprep.subr.mxu0 0.0
          %563 = vmatpush1.msra.mxu0 0.0
          %564 = vmatprep.subr.mxu0 0.0
          %565 = vmatpush1.msra.mxu0 0.0
          %566 = vmatprep.subr.mxu0 0.0
          %567 = vmatpush1.msra.mxu0 0.0
          %568 = vmatprep.subr.mxu0 0.0
          %569 = vmatpush1.msra.mxu0 0.0
          %570 = vmatprep.subr.mxu0 0.0
          %571 = vmatpush1.msra.mxu0 0.0
          %572 = vmatprep.subr.mxu0 0.0
          %573 = vmatpush1.msra.mxu0 0.0
          %574 = vmatprep.subr.mxu0 0.0
          %575 = vmatpush1.msra.mxu0 0.0
          %576 = vmatprep.subr.mxu0 0.0
          %577 = vmatpush1.msra.mxu0 0.0
          %578 = vmatprep.subr.mxu0 0.0
          %579 = vmatpush1.msra.mxu0 0.0
          %580 = vmatprep.subr.mxu0 0.0
          %581 = vmatpush1.msra.mxu0 0.0
          %582 = vmatprep.subr.mxu0 0.0
          %583 = vmatpush1.msra.mxu0 0.0
          %584 = vmatprep.subr.mxu0 0.0
          %585 = vmatpush1.msra.mxu0 0.0
          %586 = vmatprep.subr.mxu0 0.0
          %587 = vmatpush1.msra.mxu0 0.0
          %588 = vmatprep.subr.mxu0 0.0
          %589 = vmatpush1.msra.mxu0 0.0
          %590 = vmatprep.subr.mxu0 0.0
          %591 = vmatpush1.msra.mxu0 %v555
          %592 = vmatprep.subr.mxu0 0.0
          %593 = vmatpush2.msra.mxu0 0.0
          %594 = vmatprep.subr.mxu0 0.0
          %595 = vmatpush2.msra.mxu0 0.0
          %596 = vmatprep.subr.mxu0 0.0
          %597 = vmatpush2.msra.mxu0 0.0
          %598 = vmatprep.subr.mxu0 0.0
          %599 = vmatpush2.msra.mxu0 0.0
          %600 = vmatprep.subr.mxu0 0.0
          %601 = vmatpush2.msra.mxu0 0.0
          %602 = vmatprep.subr.mxu0 0.0
          %603 = vmatpush2.msra.mxu0 0.0
          %604 = vmatprep.subr.mxu0 0.0
          %605 = vmatpush2.msra.mxu0 0.0
          %606 = vmatprep.subr.mxu0 0.0
          %607 = vmatpush2.msra.mxu0 0.0
          %608 = vmatprep.subr.mxu0 0.0
          %609 = vmatpush2.msra.mxu0 0.0
          %610 = vmatprep.subr.mxu0 0.0
          %611 = vmatpush2.msra.mxu0 0.0
          %612 = vmatprep.subr.mxu0 0.0
          %613 = vmatpush2.msra.mxu0 0.0
          %614 = vmatprep.subr.mxu0 0.0
          %615 = vmatpush2.msra.mxu0 0.0
          %616 = vmatprep.subr.mxu0 0.0
          %617 = vmatpush2.msra.mxu0 0.0
          %618 = vmatprep.subr.mxu0 0.0
          %619 = vmatpush2.msra.mxu0 0.0
          %620 = vmatprep.subr.mxu0 0.0
          %621 = vmatpush2.msra.mxu0 0.0
          %622 = vmatprep.subr.mxu0 0.0
          %623 = vmatpush2.msra.mxu0 0.0
          %624 = vmatprep.mubr.f32.mxu0 0.0
          %625 = vmatmul.mubr.f32.gmra.mxu0 %v558
          %v626 = vpop.f32.mrf.mxu0
          %v627 = vadd.f32 0.0, %v626
          %v628 = vpop.f32.mrf.mxu0
          %629 = vdwg.mxu0
          %630 = vst [vmem:[%s315] sm:$0xff] %v627
        $region64: #{tpu_custom_call.1} parent=39 // pred_fallthru
          _
        %s631 = sand.u32 %s158, 1
        %s632 = scalar_lea.sflag [#allocation5], %s631
        %s633 = sand.u32 %s158, 1
        %s634 = smul.addr %s633, 8
        %s635 = scalar_lea.vmem [#allocation10], %s634
        // Predicated region
        $region65: #{tpu_custom_call.1} parent=39 // pred_check
          %p636 = pneg %p168
        $region66: #{tpu_custom_call.1} parent=39 // pred_check_branch
          %638 = sbr.rel (%p636) target = $region68
        $region67: #{tpu_custom_call.1} parent=39 // pred_region
          %s640 = ssub.s32 128, 128
          %641 = vsyncadd %s632, %s640
          %s642 = smul.addr %s27, 128
          %s643 = scalar_lea.hbm %s5, %s642
          %s645 = sshll.u32 %s635, 4
          %s646 = int_to_ptr.vmem [resolvable:$true] %s645
          %648 = dma.vmem_to_hbm [thread:$0]  %s646, 128, %s643, %s632
        $region68: #{tpu_custom_call.1} parent=39 // pred_fallthru
          _
      $region40: #{tpu_custom_call.1} parent=5 // pred_fallthru
        _
      %p649 = scmp.le.s32.totalorder 2, %s18
      // Predicated region
      $region69: #{tpu_custom_call.1} parent=5 // pred_check
        %p650 = pneg %p649
      $region70: #{tpu_custom_call.1} parent=5 // pred_check_branch
        %652 = sbr.rel (%p650) target = $region72
      $region71: #{tpu_custom_call.1} parent=5 // pred_region
        %s653 = ssub.s32 %s18, 2
        // Predicated region
        $region73: #{tpu_custom_call.1} parent=71 // pred_check
          %p654 = pneg %p174
        $region74: #{tpu_custom_call.1} parent=71 // pred_check_branch
          %656 = sbr.rel (%p654) target = $region76
        $region75: #{tpu_custom_call.1} parent=71 // pred_region
          %s657 = sand.u32 %s159, 1
          %s658 = scalar_lea.sflag [#allocation5], %s657
          %s659 = sand.u32 %s159, 1
          %s660 = smul.addr %s659, 8
          %s661 = scalar_lea.vmem [#allocation10], %s660
          %662 = dma.done %s658, 128
        $region76: #{tpu_custom_call.1} parent=71 // pred_fallthru
          _
      $region72: #{tpu_custom_call.1} parent=5 // pred_fallthru
        _
    $region6: #{tpu_custom_call.1} parent=1 // loop_footer
      %s22 = sadd.s32 1, %s18
    $region7: #{tpu_custom_call.1} parent=1 // loop_footer_branch
      %17 = sbr.rel target = $region3
    $region8: #{tpu_custom_call.1} parent=1 // loop_exit
      _
    %663 = vsyncpa [#allocation4], 1
    %s664 = scalar_lea.sflag [#allocation4], 1
    %665 = vsyncpa %s664, 1
    %666 = vsyncpa [#allocation7], 1
    %667 = vsyncpa [#allocation5], 1
    %s668 = scalar_lea.sflag [#allocation5], 1
    %669 = vsyncpa %s668, 1

</llo_original>
